<compile_context>
chip_gen: v6e
topology: v6e:2x2x1
jax: 0.10.0
libtpu: 0.0.40
codegen_flags: <defaults>
</compile_context>

<pallas_src>
import math
import jax
import jax.numpy as jnp
from jax.experimental import pallas as pl
from jax.experimental.pallas import tpu as pltpu

D = 256            # fusion feature dim
NCAT = 26          # output categories
NOUT_PAD = 128     # lane-padded output width
KP = 256           # packed input width (160 features + 4 bias cols + pad)
BN_EPS = 1e-5


def _round_up(x, m):
    return (x + m - 1) // m * m


# ----------------------------------------------------------------------------
# Kernel
# ----------------------------------------------------------------------------
def _fusion_kernel(x_ref, wstk_ref, wq_ref, wkv_ref, w1_ref, w2_ref, pvec_ref,
                   out_ref):
    f32 = jnp.float32
    bf16 = jnp.bfloat16

    x = x_ref[...]                                              # (TB, KP) bf16

    # All four modality projections (+ biases via indicator columns) in ONE
    # block-structured matmul.  Lane block m = projection of modality m.
    p = jnp.dot(x, wstk_ref[...], preferred_element_type=f32)   # (TB, 4*D) f32

    # target = mean over the 4 modalities (lane blocks)
    tgt = (p[:, 0:D] + p[:, D:2 * D] + p[:, 2 * D:3 * D] + p[:, 3 * D:4 * D]) \
        * f32(0.25)                                             # (TB, D)

    # Fused k/v projection of the shared target (1/sqrt(D) pre-folded into wk/bk).
    kv = jnp.dot(tgt.astype(bf16), wkv_ref[...], preferred_element_type=f32)
    k = kv[:, 0:D] + pvec_ref[1:2, :]                           # (TB, D) scaled
    v = kv[:, D:2 * D] + pvec_ref[2:3, :]                       # (TB, D)

    bq = pvec_ref[0:1, :]
    wq = wq_ref[...]
    w1 = w1_ref[...]

    # Per-modality cross attention + accumulating fc1 (no k4/v4/o_cat copies).
    h = None
    for m in range(4):
        src = p[:, m * D:(m + 1) * D]
        q = jnp.dot(src.astype(bf16), wq, preferred_element_type=f32) + bq
        logits = q * k                                          # scale folded in
        logits = logits - jnp.max(logits, axis=-1, keepdims=True)
        e = jnp.exp(logits)
        attn = e * pl.reciprocal(jnp.sum(e, axis=-1, keepdims=True), approx=True)
        o = (attn * v).astype(bf16)                             # (TB, D)
        term = jnp.dot(o, w1[m * D:(m + 1) * D, :], preferred_element_type=f32)
        h = term if h is None else h + term

    # fc1 bias with BatchNorm (eval) scale/shift pre-folded, then ReLU.
    # Dropout = identity in eval.
    h = jnp.maximum(h + pvec_ref[3:4, :], f32(0.0))

    # fc2 into a lane-padded 128-wide output (unmasked store).
    out_ref[...] = (jnp.dot(h.astype(bf16), w2_ref[...], preferred_element_type=f32)
                    + pvec_ref[4:5, 0:NOUT_PAD])


# ----------------------------------------------------------------------------
# Host-side packing
# ----------------------------------------------------------------------------
def _pack_params(params, dims):
    """Pack weights for the kernel. Linear weights are (in, out)."""
    f32 = jnp.float32
    bf16 = jnp.bfloat16
    ktot = sum(dims)
    assert ktot + 4 <= KP
    offs = [0]
    for d in dims[:-1]:
        offs.append(offs[-1] + d)

    # Block-structured stacked projection weight: lane block m only reads
    # modality m's feature columns; row ktot+m carries modality m's bias
    # (matched by an indicator "1" column in the packed inputs).
    wstk = jnp.zeros((KP, 4 * D), f32)
    names = ["c", "b", "f", "t"]
    for m, name in enumerate(names):
        wstk = wstk.at[offs[m]:offs[m] + dims[m], m * D:(m + 1) * D].set(
            params["w" + name])
        wstk = wstk.at[ktot + m, m * D:(m + 1) * D].set(
            params["b" + name].reshape(-1))

    # Fold 1/sqrt(D) into wk / bk; fuse k and v weights into one matmul.
    inv_sqrt_d = 1.0 / math.sqrt(D)
    wkv = jnp.concatenate([params["wk"] * inv_sqrt_d, params["wv"]], axis=1)

    # Eval-mode BatchNorm folded into fc1 (exactly equivalent).
    bn_scale = params["gamma"].reshape(-1) / jnp.sqrt(params["rvar"].reshape(-1) + BN_EPS)
    bn_shift = params["beta"].reshape(-1) - params["rmean"].reshape(-1) * bn_scale
    w1f = params["w1"] * bn_scale[None, :]
    b1f = params["b1"].reshape(-1) * bn_scale + bn_shift

    w2p = jnp.zeros((D, NOUT_PAD), f32).at[:, :NCAT].set(params["w2"])
    b2p = jnp.zeros((D,), f32).at[:NCAT].set(params["b2"].reshape(-1))

    # Pack the small vectors into one (8, 256) f32 array (single DMA).
    pvec = jnp.stack([
        params["bq"].reshape(-1),            # row 0: bq
        params["bk"].reshape(-1) * inv_sqrt_d,  # row 1: bk / sqrt(D)
        params["bv"].reshape(-1),            # row 2: bv
        b1f,                                 # row 3: b1 (BN-fused)
        b2p,                                 # row 4: b2 (padded)
        jnp.zeros((D,), f32),                # rows 5-7: pad
        jnp.zeros((D,), f32),
        jnp.zeros((D,), f32),
    ], axis=0)

    return {
        "wstk": wstk.astype(bf16),
        "wq": params["wq"].astype(bf16),
        "wkv": wkv.astype(bf16),
        "w1": w1f.astype(bf16),
        "w2": w2p.astype(bf16),
        "pvec": pvec,
        "offs": offs,
        "ktot": ktot,
    }


def _pack_inputs(feats, offs, ktot, TB):
    """Pack the 4 modality inputs into ONE lane-dense (Bp, KP) bf16 row per
    sample (disjoint column ranges + per-modality bias indicator columns)."""
    B = feats[0].shape[0]
    nbt = -(-B // TB)
    Bp = nbt * TB
    xpack = jnp.zeros((Bp, KP), jnp.float32)
    for m, f in enumerate(feats):
        xpack = xpack.at[:B, offs[m]:offs[m] + f.shape[1]].set(f)
        xpack = xpack.at[:B, ktot + m].set(1.0)   # bias indicator column
    return xpack.astype(jnp.bfloat16), nbt, Bp


# ----------------------------------------------------------------------------
# pallas_call wrapper
# ----------------------------------------------------------------------------
def fusion_forward(xc, xb, xf, xt, packed, tb=512):
    B = xc.shape[0]
    # Cap the batch tile so nbt >= 2 whenever possible (keeps both v7x
    # TensorCores busy on the "parallel" axis); TB must be a multiple of 8.
    TB = min(tb, _round_up(max(-(-B // 2), 8), 8))
    x2, nbt, Bp = _pack_inputs([xc, xb, xf, xt], packed["offs"], packed["ktot"], TB)

    grid_spec = pltpu.PrefetchScalarGridSpec(
        num_scalar_prefetch=0,
        grid=(nbt,),
        in_specs=[
            pl.BlockSpec((TB, KP), lambda t: (t, 0)),           # packed inputs
            pl.BlockSpec((KP, 4 * D), lambda t: (0, 0)),        # block-struct proj W+b
            pl.BlockSpec((D, D), lambda t: (0, 0)),             # wq
            pl.BlockSpec((D, 2 * D), lambda t: (0, 0)),         # wk/sqrt(D) || wv
            pl.BlockSpec((4 * D, D), lambda t: (0, 0)),         # w1 (BN-fused)
            pl.BlockSpec((D, NOUT_PAD), lambda t: (0, 0)),      # w2 (padded)
            pl.BlockSpec((8, D), lambda t: (0, 0)),             # packed biases
        ],
        out_specs=pl.BlockSpec((TB, NOUT_PAD), lambda t: (t, 0)),
    )

    out = pl.pallas_call(
        _fusion_kernel,
        out_shape=jax.ShapeDtypeStruct((Bp, NOUT_PAD), jnp.float32),
        grid_spec=grid_spec,
        compiler_params=pltpu.CompilerParams(
            dimension_semantics=("parallel",),
            vmem_limit_bytes=48 * 1024 * 1024,
        ),
    )(x2, packed["wstk"], packed["wq"], packed["wkv"], packed["w1"],
      packed["w2"], packed["pvec"])

    return out[:B, :NCAT]


# ----------------------------------------------------------------------------
# Synthetic parameters & pure-JAX reference
# ----------------------------------------------------------------------------
def _init_params(key, fc_dim, fb_dim, ff_dim, ft_dim):
    """Deterministic synthetic parameters. Linear weights stored as (in, out)."""
    keys = jax.random.split(key, 24)
    ki = iter(keys)

    def lin(in_dim, out_dim):
        w = jax.random.normal(next(ki), (in_dim, out_dim), jnp.float32) * (1.0 / math.sqrt(in_dim))
        b = jax.random.normal(next(ki), (1, out_dim), jnp.float32) * 0.01
        return w, b

    p = {}
    p["wc"], p["bc"] = lin(fc_dim, D)
    p["wb"], p["bb"] = lin(fb_dim, D)
    p["wf"], p["bf"] = lin(ff_dim, D)
    p["wt"], p["bt"] = lin(ft_dim, D)
    p["wq"], p["bq"] = lin(D, D)
    p["wk"], p["bk"] = lin(D, D)
    p["wv"], p["bv"] = lin(D, D)
    p["w1"], p["b1"] = lin(4 * D, D)
    p["w2"], p["b2"] = lin(D, NCAT)
    p["gamma"] = jax.random.normal(next(ki), (1, D), jnp.float32) * 0.1 + 1.0
    p["beta"] = jax.random.normal(next(ki), (1, D), jnp.float32) * 0.1
    p["rmean"] = jax.random.normal(next(ki), (1, D), jnp.float32) * 0.05
    p["rvar"] = jnp.abs(jax.random.normal(next(ki), (1, D), jnp.float32)) * 0.1 + 1.0
    return p


def _reference(xc, xb, xf, xt, p):
    """Pure-JAX f32 reference of the same forward pass."""
    ctx = xc @ p["wc"] + p["bc"]
    body = xb @ p["wb"] + p["bb"]
    face = xf @ p["wf"] + p["bf"]
    text = xt @ p["wt"] + p["bt"]
    target = (ctx + body + face + text) / 4.0
    k = target @ p["wk"] + p["bk"]
    v = target @ p["wv"] + p["bv"]

    def ca(src):
        q = src @ p["wq"] + p["bq"]
        attn = jax.nn.softmax(q * k / math.sqrt(D), axis=-1)
        return attn * v

    fuse = jnp.concatenate([ca(ctx), ca(body), ca(face), ca(text)], axis=-1)
    h = fuse @ p["w1"] + p["b1"]
    h = (h - p["rmean"]) / jnp.sqrt(p["rvar"] + BN_EPS) * p["gamma"] + p["beta"]
    h = jnp.maximum(h, 0.0)
    return h @ p["w2"] + p["b2"]


if __name__ == "__main__":
    B = 8
    num_context_features, num_body_features = 32, 48
    num_face_features, num_text_features = 16, 64

    key = jax.random.PRNGKey(0)
    kx, kp_key = jax.random.split(key)
    kxs = jax.random.split(kx, 4)
    x_context = jax.random.normal(kxs[0], (B, num_context_features), jnp.float32)
    x_body = jax.random.normal(kxs[1], (B, num_body_features), jnp.float32)
    x_face = jax.random.normal(kxs[2], (B, num_face_features), jnp.float32)
    x_text = jax.random.normal(kxs[3], (B, num_text_features), jnp.float32)

    params = _init_params(kp_key, num_context_features, num_body_features,
                          num_face_features, num_text_features)
    packed = _pack_params(params, [num_context_features, num_body_features,
                                   num_face_features, num_text_features])

    out = fusion_forward(x_context, x_body, x_face, x_text, packed)
    out = jax.block_until_ready(out)

    ref = _reference(x_context, x_body, x_face, x_text, params)
    assert out.shape == (B, NCAT)
    # bf16 MXU operands + approx reciprocal -> relaxed tolerance vs f32 reference.
    assert jnp.allclose(out, ref, atol=2e-2, rtol=2e-2), "mismatch vs reference"

    print("KERNEL_OK")
</pallas_src>

<mosaic_0001>
module attributes {stable_mosaic.version = 11 : i64} {
  func.func @_fusion_kernel(%arg0: i32, %arg1: memref<8x256xbf16, #tpu.memory_space<vmem>>, %arg2: memref<256x1024xbf16, #tpu.memory_space<vmem>>, %arg3: memref<256x256xbf16, #tpu.memory_space<vmem>>, %arg4: memref<256x512xbf16, #tpu.memory_space<vmem>>, %arg5: memref<1024x256xbf16, #tpu.memory_space<vmem>>, %arg6: memref<256x128xbf16, #tpu.memory_space<vmem>>, %arg7: memref<8x256xf32, #tpu.memory_space<vmem>>, %arg8: memref<8x128xf32, #tpu.memory_space<vmem>>) attributes {dimension_semantics = [#tpu.dimension_semantics<parallel>], iteration_bounds = array<i64: 1>, scalar_prefetch = 0 : i64, scratch_operands = 0 : i64, tpu.core_type = #tpu.core_type<tc>, window_params = [{transform_indices = @transform_0, window_bounds = array<i64: 8, 256>}, {pipeline_mode = #tpu.pipeline_mode<synchronous>, transform_indices = @transform_1, window_bounds = array<i64: 256, 1024>}, {pipeline_mode = #tpu.pipeline_mode<synchronous>, transform_indices = @transform_2, window_bounds = array<i64: 256, 256>}, {pipeline_mode = #tpu.pipeline_mode<synchronous>, transform_indices = @transform_3, window_bounds = array<i64: 256, 512>}, {pipeline_mode = #tpu.pipeline_mode<synchronous>, transform_indices = @transform_4, window_bounds = array<i64: 1024, 256>}, {pipeline_mode = #tpu.pipeline_mode<synchronous>, transform_indices = @transform_5, window_bounds = array<i64: 256, 128>}, {pipeline_mode = #tpu.pipeline_mode<synchronous>, transform_indices = @transform_6, window_bounds = array<i64: 8, 256>}, {transform_indices = @transform_7, window_bounds = array<i64: 8, 128>}]} {
    %c0 = arith.constant 0 : index
    %c0_0 = arith.constant 0 : index
    %0 = vector.load %arg1[%c0, %c0_0] : memref<8x256xbf16, #tpu.memory_space<vmem>>, vector<8x256xbf16>
    %c0_1 = arith.constant 0 : index
    %c0_2 = arith.constant 0 : index
    %1 = vector.load %arg2[%c0_1, %c0_2] : memref<256x1024xbf16, #tpu.memory_space<vmem>>, vector<256x1024xbf16>
    %cst = arith.constant dense<0.000000e+00> : vector<8x1024xf32>
    %2 = tpu.matmul %0, %1, %cst {dimension_numbers = #tpu.dot_dimension_numbers<[1], [0], [0], [1], [0, 0, 1, 1], [], []>} : vector<8x256xbf16>, vector<256x1024xbf16>, vector<8x1024xf32> -> vector<8x1024xf32>
    %3 = vector.extract_strided_slice %2 {offsets = [0, 0], sizes = [8, 256], strides = [1, 1]} : vector<8x1024xf32> to vector<8x256xf32>
    %4 = vector.extract_strided_slice %2 {offsets = [0, 256], sizes = [8, 256], strides = [1, 1]} : vector<8x1024xf32> to vector<8x256xf32>
    %5 = arith.addf %3, %4 : vector<8x256xf32>
    %6 = vector.extract_strided_slice %2 {offsets = [0, 512], sizes = [8, 256], strides = [1, 1]} : vector<8x1024xf32> to vector<8x256xf32>
    %7 = arith.addf %5, %6 : vector<8x256xf32>
    %8 = vector.extract_strided_slice %2 {offsets = [0, 768], sizes = [8, 256], strides = [1, 1]} : vector<8x1024xf32> to vector<8x256xf32>
    %9 = arith.addf %7, %8 : vector<8x256xf32>
    %cst_3 = arith.constant 2.500000e-01 : f32
    %10 = vector.broadcast %cst_3 : f32 to vector<8x256xf32>
    %11 = arith.mulf %9, %10 : vector<8x256xf32>
    %12 = arith.truncf %11 : vector<8x256xf32> to vector<8x256xbf16>
    %c0_4 = arith.constant 0 : index
    %c0_5 = arith.constant 0 : index
    %13 = vector.load %arg4[%c0_4, %c0_5] : memref<256x512xbf16, #tpu.memory_space<vmem>>, vector<256x512xbf16>
    %cst_6 = arith.constant dense<0.000000e+00> : vector<8x512xf32>
    %14 = tpu.matmul %12, %13, %cst_6 {dimension_numbers = #tpu.dot_dimension_numbers<[1], [0], [0], [1], [0, 0, 1, 1], [], []>} : vector<8x256xbf16>, vector<256x512xbf16>, vector<8x512xf32> -> vector<8x512xf32>
    %15 = vector.extract_strided_slice %14 {offsets = [0, 0], sizes = [8, 256], strides = [1, 1]} : vector<8x512xf32> to vector<8x256xf32>
    %c1 = arith.constant 1 : index
    %c0_7 = arith.constant 0 : index
    %16 = vector.load %arg7[%c1, %c0_7] : memref<8x256xf32, #tpu.memory_space<vmem>>, vector<1x256xf32>
    %17 = vector.broadcast %16 : vector<1x256xf32> to vector<8x256xf32>
    %18 = arith.addf %15, %17 : vector<8x256xf32>
    %19 = vector.extract_strided_slice %14 {offsets = [0, 256], sizes = [8, 256], strides = [1, 1]} : vector<8x512xf32> to vector<8x256xf32>
    %c2 = arith.constant 2 : index
    %c0_8 = arith.constant 0 : index
    %20 = vector.load %arg7[%c2, %c0_8] : memref<8x256xf32, #tpu.memory_space<vmem>>, vector<1x256xf32>
    %21 = vector.broadcast %20 : vector<1x256xf32> to vector<8x256xf32>
    %22 = arith.addf %19, %21 : vector<8x256xf32>
    %c0_9 = arith.constant 0 : index
    %c0_10 = arith.constant 0 : index
    %23 = vector.load %arg7[%c0_9, %c0_10] : memref<8x256xf32, #tpu.memory_space<vmem>>, vector<1x256xf32>
    %c0_11 = arith.constant 0 : index
    %c0_12 = arith.constant 0 : index
    %24 = vector.load %arg3[%c0_11, %c0_12] : memref<256x256xbf16, #tpu.memory_space<vmem>>, vector<256x256xbf16>
    %c0_13 = arith.constant 0 : index
    %c0_14 = arith.constant 0 : index
    %25 = vector.load %arg5[%c0_13, %c0_14] : memref<1024x256xbf16, #tpu.memory_space<vmem>>, vector<1024x256xbf16>
    %26 = vector.extract_strided_slice %2 {offsets = [0, 0], sizes = [8, 256], strides = [1, 1]} : vector<8x1024xf32> to vector<8x256xf32>
    %27 = arith.truncf %26 : vector<8x256xf32> to vector<8x256xbf16>
    %cst_15 = arith.constant dense<0.000000e+00> : vector<8x256xf32>
    %28 = tpu.matmul %27, %24, %cst_15 {dimension_numbers = #tpu.dot_dimension_numbers<[1], [0], [0], [1], [0, 0, 1, 1], [], []>} : vector<8x256xbf16>, vector<256x256xbf16>, vector<8x256xf32> -> vector<8x256xf32>
    %29 = vector.broadcast %23 : vector<1x256xf32> to vector<8x256xf32>
    %30 = arith.addf %28, %29 : vector<8x256xf32>
    %31 = arith.mulf %30, %18 : vector<8x256xf32>
    %cst_16 = arith.constant dense<0xFF800000> : vector<8xf32>
    %32 = vector.multi_reduction <maximumf>, %31, %cst_16 [1] : vector<8x256xf32> to vector<8xf32>
    %33 = vector.shape_cast %32 : vector<8xf32> to vector<8x1xf32>
    %34 = vector.broadcast %33 : vector<8x1xf32> to vector<8x256xf32>
    %35 = arith.subf %31, %34 : vector<8x256xf32>
    %36 = math.exp %35 : vector<8x256xf32>
    %cst_17 = arith.constant dense<0.000000e+00> : vector<8xf32>
    %37 = vector.multi_reduction <add>, %36, %cst_17 [1] : vector<8x256xf32> to vector<8xf32>
    %38 = vector.shape_cast %37 : vector<8xf32> to vector<8x1xf32>
    %39 = tpu.reciprocal %38 {approx = true} : vector<8x1xf32> -> vector<8x1xf32>
    %40 = vector.broadcast %39 : vector<8x1xf32> to vector<8x256xf32>
    %41 = arith.mulf %36, %40 : vector<8x256xf32>
    %42 = arith.mulf %41, %22 : vector<8x256xf32>
    %43 = arith.truncf %42 : vector<8x256xf32> to vector<8x256xbf16>
    %44 = vector.extract_strided_slice %25 {offsets = [0, 0], sizes = [256, 256], strides = [1, 1]} : vector<1024x256xbf16> to vector<256x256xbf16>
    %cst_18 = arith.constant dense<0.000000e+00> : vector<8x256xf32>
    %45 = tpu.matmul %43, %44, %cst_18 {dimension_numbers = #tpu.dot_dimension_numbers<[1], [0], [0], [1], [0, 0, 1, 1], [], []>} : vector<8x256xbf16>, vector<256x256xbf16>, vector<8x256xf32> -> vector<8x256xf32>
    %46 = vector.extract_strided_slice %2 {offsets = [0, 256], sizes = [8, 256], strides = [1, 1]} : vector<8x1024xf32> to vector<8x256xf32>
    %47 = arith.truncf %46 : vector<8x256xf32> to vector<8x256xbf16>
    %cst_19 = arith.constant dense<0.000000e+00> : vector<8x256xf32>
    %48 = tpu.matmul %47, %24, %cst_19 {dimension_numbers = #tpu.dot_dimension_numbers<[1], [0], [0], [1], [0, 0, 1, 1], [], []>} : vector<8x256xbf16>, vector<256x256xbf16>, vector<8x256xf32> -> vector<8x256xf32>
    %49 = vector.broadcast %23 : vector<1x256xf32> to vector<8x256xf32>
    %50 = arith.addf %48, %49 : vector<8x256xf32>
    %51 = arith.mulf %50, %18 : vector<8x256xf32>
    %cst_20 = arith.constant dense<0xFF800000> : vector<8xf32>
    %52 = vector.multi_reduction <maximumf>, %51, %cst_20 [1] : vector<8x256xf32> to vector<8xf32>
    %53 = vector.shape_cast %52 : vector<8xf32> to vector<8x1xf32>
    %54 = vector.broadcast %53 : vector<8x1xf32> to vector<8x256xf32>
    %55 = arith.subf %51, %54 : vector<8x256xf32>
    %56 = math.exp %55 : vector<8x256xf32>
    %cst_21 = arith.constant dense<0.000000e+00> : vector<8xf32>
    %57 = vector.multi_reduction <add>, %56, %cst_21 [1] : vector<8x256xf32> to vector<8xf32>
    %58 = vector.shape_cast %57 : vector<8xf32> to vector<8x1xf32>
    %59 = tpu.reciprocal %58 {approx = true} : vector<8x1xf32> -> vector<8x1xf32>
    %60 = vector.broadcast %59 : vector<8x1xf32> to vector<8x256xf32>
    %61 = arith.mulf %56, %60 : vector<8x256xf32>
    %62 = arith.mulf %61, %22 : vector<8x256xf32>
    %63 = arith.truncf %62 : vector<8x256xf32> to vector<8x256xbf16>
    %64 = vector.extract_strided_slice %25 {offsets = [256, 0], sizes = [256, 256], strides = [1, 1]} : vector<1024x256xbf16> to vector<256x256xbf16>
    %cst_22 = arith.constant dense<0.000000e+00> : vector<8x256xf32>
    %65 = tpu.matmul %63, %64, %cst_22 {dimension_numbers = #tpu.dot_dimension_numbers<[1], [0], [0], [1], [0, 0, 1, 1], [], []>} : vector<8x256xbf16>, vector<256x256xbf16>, vector<8x256xf32> -> vector<8x256xf32>
    %66 = arith.addf %45, %65 : vector<8x256xf32>
    %67 = vector.extract_strided_slice %2 {offsets = [0, 512], sizes = [8, 256], strides = [1, 1]} : vector<8x1024xf32> to vector<8x256xf32>
    %68 = arith.truncf %67 : vector<8x256xf32> to vector<8x256xbf16>
    %cst_23 = arith.constant dense<0.000000e+00> : vector<8x256xf32>
    %69 = tpu.matmul %68, %24, %cst_23 {dimension_numbers = #tpu.dot_dimension_numbers<[1], [0], [0], [1], [0, 0, 1, 1], [], []>} : vector<8x256xbf16>, vector<256x256xbf16>, vector<8x256xf32> -> vector<8x256xf32>
    %70 = vector.broadcast %23 : vector<1x256xf32> to vector<8x256xf32>
    %71 = arith.addf %69, %70 : vector<8x256xf32>
    %72 = arith.mulf %71, %18 : vector<8x256xf32>
    %cst_24 = arith.constant dense<0xFF800000> : vector<8xf32>
    %73 = vector.multi_reduction <maximumf>, %72, %cst_24 [1] : vector<8x256xf32> to vector<8xf32>
    %74 = vector.shape_cast %73 : vector<8xf32> to vector<8x1xf32>
    %75 = vector.broadcast %74 : vector<8x1xf32> to vector<8x256xf32>
    %76 = arith.subf %72, %75 : vector<8x256xf32>
    %77 = math.exp %76 : vector<8x256xf32>
    %cst_25 = arith.constant dense<0.000000e+00> : vector<8xf32>
    %78 = vector.multi_reduction <add>, %77, %cst_25 [1] : vector<8x256xf32> to vector<8xf32>
    %79 = vector.shape_cast %78 : vector<8xf32> to vector<8x1xf32>
    %80 = tpu.reciprocal %79 {approx = true} : vector<8x1xf32> -> vector<8x1xf32>
    %81 = vector.broadcast %80 : vector<8x1xf32> to vector<8x256xf32>
    %82 = arith.mulf %77, %81 : vector<8x256xf32>
    %83 = arith.mulf %82, %22 : vector<8x256xf32>
    %84 = arith.truncf %83 : vector<8x256xf32> to vector<8x256xbf16>
    %85 = vector.extract_strided_slice %25 {offsets = [512, 0], sizes = [256, 256], strides = [1, 1]} : vector<1024x256xbf16> to vector<256x256xbf16>
    %cst_26 = arith.constant dense<0.000000e+00> : vector<8x256xf32>
    %86 = tpu.matmul %84, %85, %cst_26 {dimension_numbers = #tpu.dot_dimension_numbers<[1], [0], [0], [1], [0, 0, 1, 1], [], []>} : vector<8x256xbf16>, vector<256x256xbf16>, vector<8x256xf32> -> vector<8x256xf32>
    %87 = arith.addf %66, %86 : vector<8x256xf32>
    %88 = vector.extract_strided_slice %2 {offsets = [0, 768], sizes = [8, 256], strides = [1, 1]} : vector<8x1024xf32> to vector<8x256xf32>
    %89 = arith.truncf %88 : vector<8x256xf32> to vector<8x256xbf16>
    %cst_27 = arith.constant dense<0.000000e+00> : vector<8x256xf32>
    %90 = tpu.matmul %89, %24, %cst_27 {dimension_numbers = #tpu.dot_dimension_numbers<[1], [0], [0], [1], [0, 0, 1, 1], [], []>} : vector<8x256xbf16>, vector<256x256xbf16>, vector<8x256xf32> -> vector<8x256xf32>
    %91 = vector.broadcast %23 : vector<1x256xf32> to vector<8x256xf32>
    %92 = arith.addf %90, %91 : vector<8x256xf32>
    %93 = arith.mulf %92, %18 : vector<8x256xf32>
    %cst_28 = arith.constant dense<0xFF800000> : vector<8xf32>
    %94 = vector.multi_reduction <maximumf>, %93, %cst_28 [1] : vector<8x256xf32> to vector<8xf32>
    %95 = vector.shape_cast %94 : vector<8xf32> to vector<8x1xf32>
    %96 = vector.broadcast %95 : vector<8x1xf32> to vector<8x256xf32>
    %97 = arith.subf %93, %96 : vector<8x256xf32>
    %98 = math.exp %97 : vector<8x256xf32>
    %cst_29 = arith.constant dense<0.000000e+00> : vector<8xf32>
    %99 = vector.multi_reduction <add>, %98, %cst_29 [1] : vector<8x256xf32> to vector<8xf32>
    %100 = vector.shape_cast %99 : vector<8xf32> to vector<8x1xf32>
    %101 = tpu.reciprocal %100 {approx = true} : vector<8x1xf32> -> vector<8x1xf32>
    %102 = vector.broadcast %101 : vector<8x1xf32> to vector<8x256xf32>
    %103 = arith.mulf %98, %102 : vector<8x256xf32>
    %104 = arith.mulf %103, %22 : vector<8x256xf32>
    %105 = arith.truncf %104 : vector<8x256xf32> to vector<8x256xbf16>
    %106 = vector.extract_strided_slice %25 {offsets = [768, 0], sizes = [256, 256], strides = [1, 1]} : vector<1024x256xbf16> to vector<256x256xbf16>
    %cst_30 = arith.constant dense<0.000000e+00> : vector<8x256xf32>
    %107 = tpu.matmul %105, %106, %cst_30 {dimension_numbers = #tpu.dot_dimension_numbers<[1], [0], [0], [1], [0, 0, 1, 1], [], []>} : vector<8x256xbf16>, vector<256x256xbf16>, vector<8x256xf32> -> vector<8x256xf32>
    %108 = arith.addf %87, %107 : vector<8x256xf32>
    %c3 = arith.constant 3 : index
    %c0_31 = arith.constant 0 : index
    %109 = vector.load %arg7[%c3, %c0_31] : memref<8x256xf32, #tpu.memory_space<vmem>>, vector<1x256xf32>
    %110 = vector.broadcast %109 : vector<1x256xf32> to vector<8x256xf32>
    %111 = arith.addf %108, %110 : vector<8x256xf32>
    %cst_32 = arith.constant 0.000000e+00 : f32
    %112 = vector.broadcast %cst_32 : f32 to vector<8x256xf32>
    %113 = arith.maximumf %111, %112 : vector<8x256xf32>
    %114 = arith.truncf %113 : vector<8x256xf32> to vector<8x256xbf16>
    %c0_33 = arith.constant 0 : index
    %c0_34 = arith.constant 0 : index
    %115 = vector.load %arg6[%c0_33, %c0_34] : memref<256x128xbf16, #tpu.memory_space<vmem>>, vector<256x128xbf16>
    %cst_35 = arith.constant dense<0.000000e+00> : vector<8x128xf32>
    %116 = tpu.matmul %114, %115, %cst_35 {dimension_numbers = #tpu.dot_dimension_numbers<[1], [0], [0], [1], [0, 0, 1, 1], [], []>} : vector<8x256xbf16>, vector<256x128xbf16>, vector<8x128xf32> -> vector<8x128xf32>
    %c4 = arith.constant 4 : index
    %c0_36 = arith.constant 0 : index
    %117 = vector.load %arg7[%c4, %c0_36] : memref<8x256xf32, #tpu.memory_space<vmem>>, vector<1x128xf32>
    %118 = vector.broadcast %117 : vector<1x128xf32> to vector<8x128xf32>
    %119 = arith.addf %116, %118 : vector<8x128xf32>
    %c0_37 = arith.constant 0 : index
    %c0_38 = arith.constant 0 : index
    %120 = vector.load %arg8[%c0_37, %c0_38] : memref<8x128xf32, #tpu.memory_space<vmem>>, vector<8x128xf32>
    tpu.vector_store %arg8[%c0_37, %c0_38], %119 {strides = array<i32>} : memref<8x128xf32, #tpu.memory_space<vmem>>, vector<8x128xf32>,
    return
  }
  func.func @transform_0(%arg0: i32) -> (i32, i32) {
    %c0_i32 = arith.constant 0 : i32
    %c0_i32_0 = arith.constant 0 : i32
    return %arg0, %c0_i32 : i32, i32
  }
  func.func @transform_1(%arg0: i32) -> (i32, i32) {
    %c0_i32 = arith.constant 0 : i32
    %c0_i32_0 = arith.constant 0 : i32
    %c0_i32_1 = arith.constant 0 : i32
    return %c0_i32, %c0_i32_0 : i32, i32
  }
  func.func @transform_2(%arg0: i32) -> (i32, i32) {
    %c0_i32 = arith.constant 0 : i32
    %c0_i32_0 = arith.constant 0 : i32
    %c0_i32_1 = arith.constant 0 : i32
    return %c0_i32, %c0_i32_0 : i32, i32
  }
  func.func @transform_3(%arg0: i32) -> (i32, i32) {
    %c0_i32 = arith.constant 0 : i32
    %c0_i32_0 = arith.constant 0 : i32
    %c0_i32_1 = arith.constant 0 : i32
    return %c0_i32, %c0_i32_0 : i32, i32
  }
  func.func @transform_4(%arg0: i32) -> (i32, i32) {
    %c0_i32 = arith.constant 0 : i32
    %c0_i32_0 = arith.constant 0 : i32
    %c0_i32_1 = arith.constant 0 : i32
    return %c0_i32, %c0_i32_0 : i32, i32
  }
  func.func @transform_5(%arg0: i32) -> (i32, i32) {
    %c0_i32 = arith.constant 0 : i32
    %c0_i32_0 = arith.constant 0 : i32
    %c0_i32_1 = arith.constant 0 : i32
    return %c0_i32, %c0_i32_0 : i32, i32
  }
  func.func @transform_6(%arg0: i32) -> (i32, i32) {
    %c0_i32 = arith.constant 0 : i32
    %c0_i32_0 = arith.constant 0 : i32
    %c0_i32_1 = arith.constant 0 : i32
    return %c0_i32, %c0_i32_0 : i32, i32
  }
  func.func @transform_7(%arg0: i32) -> (i32, i32) {
    %c0_i32 = arith.constant 0 : i32
    %c0_i32_0 = arith.constant 0 : i32
    return %arg0, %c0_i32 : i32, i32
  }
}

</mosaic_0001>

<llo_original>
// kernel: tpu_custom_call.1
$region0: #{tpu_custom_call.1}
  #allocation0 [shape = 'u32[]', space=smem, size = 0x4, offset = 0x4, fixed_abs, tag = 'smem constant byte address 0x4 - core index']
  #allocation1 [shape = 'u32[144,128]{1,0:T(1,128)}', space=vmem, size = 0x12000, scoped, tag = 'internal scratch']
  %s0 = inlined_call_operand.hbm [shape: bf16[8,256], index: 0, kind: input, shape index: {}]
  %s1 = inlined_call_operand.hbm [shape: bf16[256,1024], index: 1, kind: input, shape index: {}]
  %s2 = inlined_call_operand.hbm [shape: bf16[256,256], index: 2, kind: input, shape index: {}]
  %s3 = inlined_call_operand.hbm [shape: bf16[256,512], index: 3, kind: input, shape index: {}]
  %s4 = inlined_call_operand.hbm [shape: bf16[1024,256], index: 4, kind: input, shape index: {}]
  %s5 = inlined_call_operand.hbm [shape: bf16[256,128], index: 5, kind: input, shape index: {}]
  %s6 = inlined_call_operand.hbm [shape: f32[8,256], index: 6, kind: input, shape index: {}]
  %s7 = inlined_call_operand.hbm [shape: f32[8,128], index: 7, kind: output, shape index: {}]
  %s8 = sld [smem:[#allocation0]]
  $region66: #{tpu_custom_call.1} parent=0
    _
  %s10 = ssub.s32 1, %s8
  %s11 = scalar_select 0, %s10, %s8
  $region1: #{tpu_custom_call.1} parent=0
    #allocation2 [shape = 'u8[4096]{0}', space=vmem, size = 0x1000, scoped, tag = 'input window, operand 0, single buffered']
    #allocation3 [shape = 's32[1]{0}', space=sflag, size = 0x4, scoped, tag = 'scoped memory for tpu_custom_call.1']
    #allocation4 [shape = 's32[1]{0}', space=sflag, size = 0x4, scoped, tag = 'scoped memory for tpu_custom_call.1']
    #allocation5 [shape = 'u8[524288]{0}', space=vmem, size = 0x80000, scoped, tag = 'input window, operand 1, single buffered']
    #allocation6 [shape = 's32[1]{0}', space=sflag, size = 0x4, scoped, tag = 'scoped memory for tpu_custom_call.1']
    #allocation7 [shape = 'u8[131072]{0}', space=vmem, size = 0x20000, scoped, tag = 'input window, operand 2, single buffered']
    #allocation8 [shape = 'u8[262144]{0}', space=vmem, size = 0x40000, scoped, tag = 'input window, operand 3, single buffered']
    #allocation9 [shape = 's32[1]{0}', space=sflag, size = 0x4, scoped, tag = 'scoped memory for tpu_custom_call.1']
    #allocation10 [shape = 'u8[524288]{0}', space=vmem, size = 0x80000, scoped, tag = 'input window, operand 4, single buffered']
    #allocation11 [shape = 'u8[65536]{0}', space=vmem, size = 0x10000, scoped, tag = 'input window, operand 5, single buffered']
    #allocation12 [shape = 's32[1]{0}', space=sflag, size = 0x4, scoped, tag = 'scoped memory for tpu_custom_call.1']
    #allocation13 [shape = 'u8[8192]{0}', space=vmem, size = 0x2000, scoped, tag = 'input window, operand 6, single buffered']
    #allocation14 [shape = 'u8[4096]{0}', space=vmem, size = 0x1000, scoped, tag = 'output window, operand 0, single buffered']
    %12 = vsyncpa [#allocation3], 0
    %13 = vsyncpa [#allocation6], 0
    %14 = vsyncpa [#allocation9], 0
    %15 = vsyncpa [#allocation12], 0
    %16 = vsyncpa [#allocation4], 0
    // Predicated region
    $region2: #{tpu_custom_call.1} parent=1 // pred_check
      _
    $region3: #{tpu_custom_call.1} parent=1 // pred_check_branch
      %18 = sbr.rel (0) target = $region5
    $region4: #{tpu_custom_call.1} parent=1 // pred_region
      %s20 = ssub.s32 128, 128
      %21 = vsyncadd [#allocation3], %s20
      %s23 = sshll.u32 [#allocation2], 4
      %s24 = int_to_ptr.vmem [resolvable:$true] %s23
      %26 = dma.hbm_to_vmem [thread:$0]  %s0, 128, %s24, [#allocation3]
    $region5: #{tpu_custom_call.1} parent=1 // pred_fallthru
      _
    // Predicated region
    $region6: #{tpu_custom_call.1} parent=1 // pred_check
      _
    $region7: #{tpu_custom_call.1} parent=1 // pred_check_branch
      %28 = sbr.rel (0) target = $region9
    $region8: #{tpu_custom_call.1} parent=1 // pred_region
      %s30 = ssub.s32 16384, 16384
      %31 = vsyncadd [#allocation6], %s30
      %s32 = sshll.u32 [#allocation5], 4
      %s33 = int_to_ptr.vmem [resolvable:$true] %s32
      %38 = dma.hbm_to_vmem [thread:$0]  %s1, 16384, %s33, [#allocation6], 512, 512, 32
    $region9: #{tpu_custom_call.1} parent=1 // pred_fallthru
      _
    // Predicated region
    $region10: #{tpu_custom_call.1} parent=1 // pred_check
      _
    $region11: #{tpu_custom_call.1} parent=1 // pred_check_branch
      %40 = sbr.rel (0) target = $region13
    $region12: #{tpu_custom_call.1} parent=1 // pred_region
      %s42 = ssub.s32 4096, 4096
      %43 = vsyncadd [#allocation6], %s42
      %s44 = sshll.u32 [#allocation7], 4
      %s45 = int_to_ptr.vmem [resolvable:$true] %s44
      %50 = dma.hbm_to_vmem [thread:$0]  %s2, 4096, %s45, [#allocation6], 128, 128, 8
    $region13: #{tpu_custom_call.1} parent=1 // pred_fallthru
      _
    // Predicated region
    $region14: #{tpu_custom_call.1} parent=1 // pred_check
      _
    $region15: #{tpu_custom_call.1} parent=1 // pred_check_branch
      %52 = sbr.rel (0) target = $region17
    $region16: #{tpu_custom_call.1} parent=1 // pred_region
      %s54 = ssub.s32 8192, 8192
      %55 = vsyncadd [#allocation9], %s54
      %s56 = sshll.u32 [#allocation8], 4
      %s57 = int_to_ptr.vmem [resolvable:$true] %s56
      %62 = dma.hbm_to_vmem [thread:$0]  %s3, 8192, %s57, [#allocation9], 256, 256, 16
    $region17: #{tpu_custom_call.1} parent=1 // pred_fallthru
      _
    // Predicated region
    $region18: #{tpu_custom_call.1} parent=1 // pred_check
      _
    $region19: #{tpu_custom_call.1} parent=1 // pred_check_branch
      %64 = sbr.rel (0) target = $region21
    $region20: #{tpu_custom_call.1} parent=1 // pred_region
      %s66 = ssub.s32 16384, 16384
      %67 = vsyncadd [#allocation9], %s66
      %s68 = sshll.u32 [#allocation10], 4
      %s69 = int_to_ptr.vmem [resolvable:$true] %s68
      %74 = dma.hbm_to_vmem [thread:$0]  %s4, 16384, %s69, [#allocation9], 128, 128, 8
    $region21: #{tpu_custom_call.1} parent=1 // pred_fallthru
      _
    // Predicated region
    $region22: #{tpu_custom_call.1} parent=1 // pred_check
      _
    $region23: #{tpu_custom_call.1} parent=1 // pred_check_branch
      %76 = sbr.rel (0) target = $region25
    $region24: #{tpu_custom_call.1} parent=1 // pred_region
      %s78 = ssub.s32 2048, 2048
      %79 = vsyncadd [#allocation12], %s78
      %s80 = sshll.u32 [#allocation11], 4
      %s81 = int_to_ptr.vmem [resolvable:$true] %s80
      %86 = dma.hbm_to_vmem [thread:$0]  %s5, 2048, %s81, [#allocation12], 64, 64, 4
    $region25: #{tpu_custom_call.1} parent=1 // pred_fallthru
      _
    // Predicated region
    $region26: #{tpu_custom_call.1} parent=1 // pred_check
      _
    $region27: #{tpu_custom_call.1} parent=1 // pred_check_branch
      %88 = sbr.rel (0) target = $region29
    $region28: #{tpu_custom_call.1} parent=1 // pred_region
      %s90 = ssub.s32 256, 256
      %91 = vsyncadd [#allocation12], %s90
      %s93 = sshll.u32 [#allocation13], 4
      %s94 = int_to_ptr.vmem [resolvable:$true] %s93
      %96 = dma.hbm_to_vmem [thread:$0]  %s6, 256, %s94, [#allocation12]
    $region29: #{tpu_custom_call.1} parent=1 // pred_fallthru
      _
    // Predicated region
    $region30: #{tpu_custom_call.1} parent=1 // pred_check
      _
    $region31: #{tpu_custom_call.1} parent=1 // pred_check_branch
      %98 = sbr.rel (0) target = $region33
    $region32: #{tpu_custom_call.1} parent=1 // pred_region
      %99 = dma.done [#allocation3], 128
    $region33: #{tpu_custom_call.1} parent=1 // pred_fallthru
      _
    // Predicated region
    $region34: #{tpu_custom_call.1} parent=1 // pred_check
      _
    $region35: #{tpu_custom_call.1} parent=1 // pred_check_branch
      %101 = sbr.rel (0) target = $region37
    $region36: #{tpu_custom_call.1} parent=1 // pred_region
      %102 = dma.done [#allocation6], 16384
    $region37: #{tpu_custom_call.1} parent=1 // pred_fallthru
      _
    // Predicated region
    $region38: #{tpu_custom_call.1} parent=1 // pred_check
      _
    $region39: #{tpu_custom_call.1} parent=1 // pred_check_branch
      %104 = sbr.rel (0) target = $region41
    $region40: #{tpu_custom_call.1} parent=1 // pred_region
      %105 = dma.done [#allocation6], 4096
    $region41: #{tpu_custom_call.1} parent=1 // pred_fallthru
      _
    // Predicated region
    $region42: #{tpu_custom_call.1} parent=1 // pred_check
      _
    $region43: #{tpu_custom_call.1} parent=1 // pred_check_branch
      %107 = sbr.rel (0) target = $region45
    $region44: #{tpu_custom_call.1} parent=1 // pred_region
      %108 = dma.done [#allocation9], 8192
    $region45: #{tpu_custom_call.1} parent=1 // pred_fallthru
      _
    // Predicated region
    $region46: #{tpu_custom_call.1} parent=1 // pred_check
      _
    $region47: #{tpu_custom_call.1} parent=1 // pred_check_branch
      %110 = sbr.rel (0) target = $region49
    $region48: #{tpu_custom_call.1} parent=1 // pred_region
      %111 = dma.done [#allocation9], 16384
    $region49: #{tpu_custom_call.1} parent=1 // pred_fallthru
      _
    // Predicated region
    $region50: #{tpu_custom_call.1} parent=1 // pred_check
      _
    $region51: #{tpu_custom_call.1} parent=1 // pred_check_branch
      %113 = sbr.rel (0) target = $region53
    $region52: #{tpu_custom_call.1} parent=1 // pred_region
      %114 = dma.done [#allocation12], 2048
    $region53: #{tpu_custom_call.1} parent=1 // pred_fallthru
      _
    // Predicated region
    $region54: #{tpu_custom_call.1} parent=1 // pred_check
      _
    $region55: #{tpu_custom_call.1} parent=1 // pred_check_branch
      %116 = sbr.rel (0) target = $region57
    $region56: #{tpu_custom_call.1} parent=1 // pred_region
      %117 = dma.done [#allocation12], 256
    $region57: #{tpu_custom_call.1} parent=1 // pred_fallthru
      _
    %v119 = vld [vmem:[#allocation2] sm:$0xff]
    %v120 = vld [vmem:[#allocation5] sm:$0xff]
    %v121 = vld [vmem:[#allocation5 + $0x8] sm:$0xff]
    %v122 = vld [vmem:[#allocation5 + $0x10] sm:$0xff]
    %v123 = vld [vmem:[#allocation5 + $0x18] sm:$0xff]
    %v124 = vld [vmem:[#allocation5 + $0x20] sm:$0xff]
    %v125 = vld [vmem:[#allocation5 + $0x28] sm:$0xff]
    %v126 = vld [vmem:[#allocation5 + $0x30] sm:$0xff]
    %v127 = vld [vmem:[#allocation5 + $0x38] sm:$0xff]
    %v128 = vld [vmem:[#allocation5 + $0x40] sm:$0xff]
    %v129 = vld [vmem:[#allocation5 + $0x48] sm:$0xff]
    %v130 = vld [vmem:[#allocation5 + $0x50] sm:$0xff]
    %v131 = vld [vmem:[#allocation5 + $0x58] sm:$0xff]
    %v132 = vld [vmem:[#allocation5 + $0x60] sm:$0xff]
    %v133 = vld [vmem:[#allocation5 + $0x68] sm:$0xff]
    %v134 = vld [vmem:[#allocation5 + $0x70] sm:$0xff]
    %v135 = vld [vmem:[#allocation5 + $0x78] sm:$0xff]
    %v136 = vld [vmem:[#allocation5 + $0x80] sm:$0xff]
    %v137 = vld [vmem:[#allocation5 + $0x88] sm:$0xff]
    %v138 = vld [vmem:[#allocation5 + $0x90] sm:$0xff]
    %v139 = vld [vmem:[#allocation5 + $0x98] sm:$0xff]
    %v140 = vld [vmem:[#allocation5 + $0xa0] sm:$0xff]
    %v141 = vld [vmem:[#allocation5 + $0xa8] sm:$0xff]
    %v142 = vld [vmem:[#allocation5 + $0xb0] sm:$0xff]
    %v143 = vld [vmem:[#allocation5 + $0xb8] sm:$0xff]
    %v144 = vld [vmem:[#allocation5 + $0xc0] sm:$0xff]
    %v145 = vld [vmem:[#allocation5 + $0xc8] sm:$0xff]
    %v146 = vld [vmem:[#allocation5 + $0xd0] sm:$0xff]
    %v147 = vld [vmem:[#allocation5 + $0xd8] sm:$0xff]
    %v148 = vld [vmem:[#allocation5 + $0xe0] sm:$0xff]
    %v149 = vld [vmem:[#allocation5 + $0xe8] sm:$0xff]
    %v150 = vld [vmem:[#allocation5 + $0xf0] sm:$0xff]
    %v151 = vld [vmem:[#allocation5 + $0xf8] sm:$0xff]
    %v152 = vld [vmem:[#allocation5 + $0x100] sm:$0xff]
    %v153 = vld [vmem:[#allocation5 + $0x108] sm:$0xff]
    %v154 = vld [vmem:[#allocation5 + $0x110] sm:$0xff]
    %v155 = vld [vmem:[#allocation5 + $0x118] sm:$0xff]
    %v156 = vld [vmem:[#allocation5 + $0x120] sm:$0xff]
    %v157 = vld [vmem:[#allocation5 + $0x128] sm:$0xff]
    %v158 = vld [vmem:[#allocation5 + $0x130] sm:$0xff]
    %v159 = vld [vmem:[#allocation5 + $0x138] sm:$0xff]
    %v160 = vld [vmem:[#allocation5 + $0x140] sm:$0xff]
    %v161 = vld [vmem:[#allocation5 + $0x148] sm:$0xff]
    %v162 = vld [vmem:[#allocation5 + $0x150] sm:$0xff]
    %v163 = vld [vmem:[#allocation5 + $0x158] sm:$0xff]
    %v164 = vld [vmem:[#allocation5 + $0x160] sm:$0xff]
    %v165 = vld [vmem:[#allocation5 + $0x168] sm:$0xff]
    %v166 = vld [vmem:[#allocation5 + $0x170] sm:$0xff]
    %v167 = vld [vmem:[#allocation5 + $0x178] sm:$0xff]
    %v168 = vld [vmem:[#allocation5 + $0x180] sm:$0xff]
    %v169 = vld [vmem:[#allocation5 + $0x188] sm:$0xff]
    %v170 = vld [vmem:[#allocation5 + $0x190] sm:$0xff]
    %v171 = vld [vmem:[#allocation5 + $0x198] sm:$0xff]
    %v172 = vld [vmem:[#allocation5 + $0x1a0] sm:$0xff]
    %v173 = vld [vmem:[#allocation5 + $0x1a8] sm:$0xff]
    %v174 = vld [vmem:[#allocation5 + $0x1b0] sm:$0xff]
    %v175 = vld [vmem:[#allocation5 + $0x1b8] sm:$0xff]
    %v176 = vld [vmem:[#allocation5 + $0x1c0] sm:$0xff]
    %v177 = vld [vmem:[#allocation5 + $0x1c8] sm:$0xff]
    %v178 = vld [vmem:[#allocation5 + $0x1d0] sm:$0xff]
    %v179 = vld [vmem:[#allocation5 + $0x1d8] sm:$0xff]
    %v180 = vld [vmem:[#allocation5 + $0x1e0] sm:$0xff]
    %v181 = vld [vmem:[#allocation5 + $0x1e8] sm:$0xff]
    %v182 = vld [vmem:[#allocation5 + $0x1f0] sm:$0xff]
    %v183 = vld [vmem:[#allocation5 + $0x1f8] sm:$0xff]
    %v184 = vld [vmem:[#allocation5 + $0x200] sm:$0xff]
    %v185 = vld [vmem:[#allocation5 + $0x208] sm:$0xff]
    %v186 = vld [vmem:[#allocation5 + $0x210] sm:$0xff]
    %v187 = vld [vmem:[#allocation5 + $0x218] sm:$0xff]
    %v188 = vld [vmem:[#allocation5 + $0x220] sm:$0xff]
    %v189 = vld [vmem:[#allocation5 + $0x228] sm:$0xff]
    %v190 = vld [vmem:[#allocation5 + $0x230] sm:$0xff]
    %v191 = vld [vmem:[#allocation5 + $0x238] sm:$0xff]
    %v192 = vld [vmem:[#allocation5 + $0x240] sm:$0xff]
    %v193 = vld [vmem:[#allocation5 + $0x248] sm:$0xff]
    %v194 = vld [vmem:[#allocation5 + $0x250] sm:$0xff]
    %v195 = vld [vmem:[#allocation5 + $0x258] sm:$0xff]
    %v196 = vld [vmem:[#allocation5 + $0x260] sm:$0xff]
    %v197 = vld [vmem:[#allocation5 + $0x268] sm:$0xff]
    %v198 = vld [vmem:[#allocation5 + $0x270] sm:$0xff]
    %v199 = vld [vmem:[#allocation5 + $0x278] sm:$0xff]
    %v200 = vld [vmem:[#allocation5 + $0x280] sm:$0xff]
    %v201 = vld [vmem:[#allocation5 + $0x288] sm:$0xff]
    %v202 = vld [vmem:[#allocation5 + $0x290] sm:$0xff]
    %v203 = vld [vmem:[#allocation5 + $0x298] sm:$0xff]
    %v204 = vld [vmem:[#allocation5 + $0x2a0] sm:$0xff]
    %v205 = vld [vmem:[#allocation5 + $0x2a8] sm:$0xff]
    %v206 = vld [vmem:[#allocation5 + $0x2b0] sm:$0xff]
    %v207 = vld [vmem:[#allocation5 + $0x2b8] sm:$0xff]
    %v208 = vld [vmem:[#allocation5 + $0x2c0] sm:$0xff]
    %v209 = vld [vmem:[#allocation5 + $0x2c8] sm:$0xff]
    %v210 = vld [vmem:[#allocation5 + $0x2d0] sm:$0xff]
    %v211 = vld [vmem:[#allocation5 + $0x2d8] sm:$0xff]
    %v212 = vld [vmem:[#allocation5 + $0x2e0] sm:$0xff]
    %v213 = vld [vmem:[#allocation5 + $0x2e8] sm:$0xff]
    %v214 = vld [vmem:[#allocation5 + $0x2f0] sm:$0xff]
    %v215 = vld [vmem:[#allocation5 + $0x2f8] sm:$0xff]
    %v216 = vld [vmem:[#allocation5 + $0x300] sm:$0xff]
    %v217 = vld [vmem:[#allocation5 + $0x308] sm:$0xff]
    %v218 = vld [vmem:[#allocation5 + $0x310] sm:$0xff]
    %v219 = vld [vmem:[#allocation5 + $0x318] sm:$0xff]
    %v220 = vld [vmem:[#allocation5 + $0x320] sm:$0xff]
    %v221 = vld [vmem:[#allocation5 + $0x328] sm:$0xff]
    %v222 = vld [vmem:[#allocation5 + $0x330] sm:$0xff]
    %v223 = vld [vmem:[#allocation5 + $0x338] sm:$0xff]
    %v224 = vld [vmem:[#allocation5 + $0x340] sm:$0xff]
    %v225 = vld [vmem:[#allocation5 + $0x348] sm:$0xff]
    %v226 = vld [vmem:[#allocation5 + $0x350] sm:$0xff]
    %v227 = vld [vmem:[#allocation5 + $0x358] sm:$0xff]
    %v228 = vld [vmem:[#allocation5 + $0x360] sm:$0xff]
    %v229 = vld [vmem:[#allocation5 + $0x368] sm:$0xff]
    %v230 = vld [vmem:[#allocation5 + $0x370] sm:$0xff]
    %v231 = vld [vmem:[#allocation5 + $0x378] sm:$0xff]
    %v232 = vld [vmem:[#allocation5 + $0x380] sm:$0xff]
    %v233 = vld [vmem:[#allocation5 + $0x388] sm:$0xff]
    %v234 = vld [vmem:[#allocation5 + $0x390] sm:$0xff]
    %v235 = vld [vmem:[#allocation5 + $0x398] sm:$0xff]
    %v236 = vld [vmem:[#allocation5 + $0x3a0] sm:$0xff]
    %v237 = vld [vmem:[#allocation5 + $0x3a8] sm:$0xff]
    %v238 = vld [vmem:[#allocation5 + $0x3b0] sm:$0xff]
    %v239 = vld [vmem:[#allocation5 + $0x3b8] sm:$0xff]
    %v240 = vld [vmem:[#allocation5 + $0x3c0] sm:$0xff]
    %v241 = vld [vmem:[#allocation5 + $0x3c8] sm:$0xff]
    %v242 = vld [vmem:[#allocation5 + $0x3d0] sm:$0xff]
    %v243 = vld [vmem:[#allocation5 + $0x3d8] sm:$0xff]
    %v244 = vld [vmem:[#allocation5 + $0x3e0] sm:$0xff]
    %v245 = vld [vmem:[#allocation5 + $0x3e8] sm:$0xff]
    %v246 = vld [vmem:[#allocation5 + $0x3f0] sm:$0xff]
    %v247 = vld [vmem:[#allocation5 + $0x3f8] sm:$0xff]
    %v249 = vunpack.c.l.b16 %v119
    %v250 = vunpack.c.h.b16 %v119
    %v251 = vpack.c.b16 %v249, %v249
    %v252 = vpack.c.b16 %v250, %v250
    %v383 = vunpack.c.l.b16 %v120
    %v384 = vunpack.c.h.b16 %v120
    %v385 = vunpack.c.l.b16 %v121
    %v386 = vunpack.c.h.b16 %v121
    %v387 = vunpack.c.l.b16 %v122
    %v388 = vunpack.c.h.b16 %v122
    %v389 = vunpack.c.l.b16 %v123
    %v390 = vunpack.c.h.b16 %v123
    %v391 = vunpack.c.l.b16 %v124
    %v392 = vunpack.c.h.b16 %v124
    %v393 = vunpack.c.l.b16 %v125
    %v394 = vunpack.c.h.b16 %v125
    %v395 = vunpack.c.l.b16 %v126
    %v396 = vunpack.c.h.b16 %v126
    %v397 = vunpack.c.l.b16 %v127
    %v398 = vunpack.c.h.b16 %v127
    %v399 = vunpack.c.l.b16 %v128
    %v400 = vunpack.c.h.b16 %v128
    %v401 = vunpack.c.l.b16 %v129
    %v402 = vunpack.c.h.b16 %v129
    %v403 = vunpack.c.l.b16 %v130
    %v404 = vunpack.c.h.b16 %v130
    %v405 = vunpack.c.l.b16 %v131
    %v406 = vunpack.c.h.b16 %v131
    %v407 = vunpack.c.l.b16 %v132
    %v408 = vunpack.c.h.b16 %v132
    %v409 = vunpack.c.l.b16 %v133
    %v410 = vunpack.c.h.b16 %v133
    %v411 = vunpack.c.l.b16 %v134
    %v412 = vunpack.c.h.b16 %v134
    %v413 = vunpack.c.l.b16 %v135
    %v414 = vunpack.c.h.b16 %v135
    %v415 = vunpack.c.l.b16 %v136
    %v416 = vunpack.c.h.b16 %v136
    %v417 = vunpack.c.l.b16 %v137
    %v418 = vunpack.c.h.b16 %v137
    %v419 = vunpack.c.l.b16 %v138
    %v420 = vunpack.c.h.b16 %v138
    %v421 = vunpack.c.l.b16 %v139
    %v422 = vunpack.c.h.b16 %v139
    %v423 = vunpack.c.l.b16 %v140
    %v424 = vunpack.c.h.b16 %v140
    %v425 = vunpack.c.l.b16 %v141
    %v426 = vunpack.c.h.b16 %v141
    %v427 = vunpack.c.l.b16 %v142
    %v428 = vunpack.c.h.b16 %v142
    %v429 = vunpack.c.l.b16 %v143
    %v430 = vunpack.c.h.b16 %v143
    %v431 = vunpack.c.l.b16 %v144
    %v432 = vunpack.c.h.b16 %v144
    %v433 = vunpack.c.l.b16 %v145
    %v434 = vunpack.c.h.b16 %v145
    %v435 = vunpack.c.l.b16 %v146
    %v436 = vunpack.c.h.b16 %v146
    %v437 = vunpack.c.l.b16 %v147
    %v438 = vunpack.c.h.b16 %v147
    %v439 = vunpack.c.l.b16 %v148
    %v440 = vunpack.c.h.b16 %v148
    %v441 = vunpack.c.l.b16 %v149
    %v442 = vunpack.c.h.b16 %v149
    %v443 = vunpack.c.l.b16 %v150
    %v444 = vunpack.c.h.b16 %v150
    %v445 = vunpack.c.l.b16 %v151
    %v446 = vunpack.c.h.b16 %v151
    %v447 = vunpack.c.l.b16 %v152
    %v448 = vunpack.c.h.b16 %v152
    %v449 = vunpack.c.l.b16 %v153
    %v450 = vunpack.c.h.b16 %v153
    %v451 = vunpack.c.l.b16 %v154
    %v452 = vunpack.c.h.b16 %v154
    %v453 = vunpack.c.l.b16 %v155
    %v454 = vunpack.c.h.b16 %v155
    %v455 = vunpack.c.l.b16 %v156
    %v456 = vunpack.c.h.b16 %v156
    %v457 = vunpack.c.l.b16 %v157
    %v458 = vunpack.c.h.b16 %v157
    %v459 = vunpack.c.l.b16 %v158
    %v460 = vunpack.c.h.b16 %v158
    %v461 = vunpack.c.l.b16 %v159
    %v462 = vunpack.c.h.b16 %v159
    %v463 = vunpack.c.l.b16 %v160
    %v464 = vunpack.c.h.b16 %v160
    %v465 = vunpack.c.l.b16 %v161
    %v466 = vunpack.c.h.b16 %v161
    %v467 = vunpack.c.l.b16 %v162
    %v468 = vunpack.c.h.b16 %v162
    %v469 = vunpack.c.l.b16 %v163
    %v470 = vunpack.c.h.b16 %v163
    %v471 = vunpack.c.l.b16 %v164
    %v472 = vunpack.c.h.b16 %v164
    %v473 = vunpack.c.l.b16 %v165
    %v474 = vunpack.c.h.b16 %v165
    %v475 = vunpack.c.l.b16 %v166
    %v476 = vunpack.c.h.b16 %v166
    %v477 = vunpack.c.l.b16 %v167
    %v478 = vunpack.c.h.b16 %v167
    %v479 = vunpack.c.l.b16 %v168
    %v480 = vunpack.c.h.b16 %v168
    %v481 = vunpack.c.l.b16 %v169
    %v482 = vunpack.c.h.b16 %v169
    %v483 = vunpack.c.l.b16 %v170
    %v484 = vunpack.c.h.b16 %v170
    %v485 = vunpack.c.l.b16 %v171
    %v486 = vunpack.c.h.b16 %v171
    %v487 = vunpack.c.l.b16 %v172
    %v488 = vunpack.c.h.b16 %v172
    %v489 = vunpack.c.l.b16 %v173
    %v490 = vunpack.c.h.b16 %v173
    %v491 = vunpack.c.l.b16 %v174
    %v492 = vunpack.c.h.b16 %v174
    %v493 = vunpack.c.l.b16 %v175
    %v494 = vunpack.c.h.b16 %v175
    %v495 = vunpack.c.l.b16 %v176
    %v496 = vunpack.c.h.b16 %v176
    %v497 = vunpack.c.l.b16 %v177
    %v498 = vunpack.c.h.b16 %v177
    %v499 = vunpack.c.l.b16 %v178
    %v500 = vunpack.c.h.b16 %v178
    %v501 = vunpack.c.l.b16 %v179
    %v502 = vunpack.c.h.b16 %v179
    %v503 = vunpack.c.l.b16 %v180
    %v504 = vunpack.c.h.b16 %v180
    %v505 = vunpack.c.l.b16 %v181
    %v506 = vunpack.c.h.b16 %v181
    %v507 = vunpack.c.l.b16 %v182
    %v508 = vunpack.c.h.b16 %v182
    %v509 = vunpack.c.l.b16 %v183
    %v510 = vunpack.c.h.b16 %v183
    %v511 = vunpack.c.l.b16 %v184
    %v512 = vunpack.c.h.b16 %v184
    %v513 = vunpack.c.l.b16 %v185
    %v514 = vunpack.c.h.b16 %v185
    %v515 = vunpack.c.l.b16 %v186
    %v516 = vunpack.c.h.b16 %v186
    %v517 = vunpack.c.l.b16 %v187
    %v518 = vunpack.c.h.b16 %v187
    %v519 = vunpack.c.l.b16 %v188
    %v520 = vunpack.c.h.b16 %v188
    %v521 = vunpack.c.l.b16 %v189
    %v522 = vunpack.c.h.b16 %v189
    %v523 = vunpack.c.l.b16 %v190
    %v524 = vunpack.c.h.b16 %v190
    %v525 = vunpack.c.l.b16 %v191
    %v526 = vunpack.c.h.b16 %v191
    %v527 = vunpack.c.l.b16 %v192
    %v528 = vunpack.c.h.b16 %v192
    %v529 = vunpack.c.l.b16 %v193
    %v530 = vunpack.c.h.b16 %v193
    %v531 = vunpack.c.l.b16 %v194
    %v532 = vunpack.c.h.b16 %v194
    %v533 = vunpack.c.l.b16 %v195
    %v534 = vunpack.c.h.b16 %v195
    %v535 = vunpack.c.l.b16 %v196
    %v536 = vunpack.c.h.b16 %v196
    %v537 = vunpack.c.l.b16 %v197
    %v538 = vunpack.c.h.b16 %v197
    %v539 = vunpack.c.l.b16 %v198
    %v540 = vunpack.c.h.b16 %v198
    %v541 = vunpack.c.l.b16 %v199
    %v542 = vunpack.c.h.b16 %v199
    %v543 = vunpack.c.l.b16 %v200
    %v544 = vunpack.c.h.b16 %v200
    %v545 = vunpack.c.l.b16 %v201
    %v546 = vunpack.c.h.b16 %v201
    %v547 = vunpack.c.l.b16 %v202
    %v548 = vunpack.c.h.b16 %v202
    %v549 = vunpack.c.l.b16 %v203
    %v550 = vunpack.c.h.b16 %v203
    %v551 = vunpack.c.l.b16 %v204
    %v552 = vunpack.c.h.b16 %v204
    %v553 = vunpack.c.l.b16 %v205
    %v554 = vunpack.c.h.b16 %v205
    %v555 = vunpack.c.l.b16 %v206
    %v556 = vunpack.c.h.b16 %v206
    %v557 = vunpack.c.l.b16 %v207
    %v558 = vunpack.c.h.b16 %v207
    %v559 = vunpack.c.l.b16 %v208
    %v560 = vunpack.c.h.b16 %v208
    %v561 = vunpack.c.l.b16 %v209
    %v562 = vunpack.c.h.b16 %v209
    %v563 = vunpack.c.l.b16 %v210
    %v564 = vunpack.c.h.b16 %v210
    %v565 = vunpack.c.l.b16 %v211
    %v566 = vunpack.c.h.b16 %v211
    %v567 = vunpack.c.l.b16 %v212
    %v568 = vunpack.c.h.b16 %v212
    %v569 = vunpack.c.l.b16 %v213
    %v570 = vunpack.c.h.b16 %v213
    %v571 = vunpack.c.l.b16 %v214
    %v572 = vunpack.c.h.b16 %v214
    %v573 = vunpack.c.l.b16 %v215
    %v574 = vunpack.c.h.b16 %v215
    %v575 = vunpack.c.l.b16 %v216
    %v576 = vunpack.c.h.b16 %v216
    %v577 = vunpack.c.l.b16 %v217
    %v578 = vunpack.c.h.b16 %v217
    %v579 = vunpack.c.l.b16 %v218
    %v580 = vunpack.c.h.b16 %v218
    %v581 = vunpack.c.l.b16 %v219
    %v582 = vunpack.c.h.b16 %v219
    %v583 = vunpack.c.l.b16 %v220
    %v584 = vunpack.c.h.b16 %v220
    %v585 = vunpack.c.l.b16 %v221
    %v586 = vunpack.c.h.b16 %v221
    %v587 = vunpack.c.l.b16 %v222
    %v588 = vunpack.c.h.b16 %v222
    %v589 = vunpack.c.l.b16 %v223
    %v590 = vunpack.c.h.b16 %v223
    %v591 = vunpack.c.l.b16 %v224
    %v592 = vunpack.c.h.b16 %v224
    %v593 = vunpack.c.l.b16 %v225
    %v594 = vunpack.c.h.b16 %v225
    %v595 = vunpack.c.l.b16 %v226
    %v596 = vunpack.c.h.b16 %v226
    %v597 = vunpack.c.l.b16 %v227
    %v598 = vunpack.c.h.b16 %v227
    %v599 = vunpack.c.l.b16 %v228
    %v600 = vunpack.c.h.b16 %v228
    %v601 = vunpack.c.l.b16 %v229
    %v602 = vunpack.c.h.b16 %v229
    %v603 = vunpack.c.l.b16 %v230
    %v604 = vunpack.c.h.b16 %v230
    %v605 = vunpack.c.l.b16 %v231
    %v606 = vunpack.c.h.b16 %v231
    %v607 = vunpack.c.l.b16 %v232
    %v608 = vunpack.c.h.b16 %v232
    %v609 = vunpack.c.l.b16 %v233
    %v610 = vunpack.c.h.b16 %v233
    %v611 = vunpack.c.l.b16 %v234
    %v612 = vunpack.c.h.b16 %v234
    %v613 = vunpack.c.l.b16 %v235
    %v614 = vunpack.c.h.b16 %v235
    %v615 = vunpack.c.l.b16 %v236
    %v616 = vunpack.c.h.b16 %v236
    %v617 = vunpack.c.l.b16 %v237
    %v618 = vunpack.c.h.b16 %v237
    %v619 = vunpack.c.l.b16 %v238
    %v620 = vunpack.c.h.b16 %v238
    %v621 = vunpack.c.l.b16 %v239
    %v622 = vunpack.c.h.b16 %v239
    %v623 = vunpack.c.l.b16 %v240
    %v624 = vunpack.c.h.b16 %v240
    %v625 = vunpack.c.l.b16 %v241
    %v626 = vunpack.c.h.b16 %v241
    %v627 = vunpack.c.l.b16 %v242
    %v628 = vunpack.c.h.b16 %v242
    %v629 = vunpack.c.l.b16 %v243
    %v630 = vunpack.c.h.b16 %v243
    %v631 = vunpack.c.l.b16 %v244
    %v632 = vunpack.c.h.b16 %v244
    %v633 = vunpack.c.l.b16 %v245
    %v634 = vunpack.c.h.b16 %v245
    %v635 = vunpack.c.l.b16 %v246
    %v636 = vunpack.c.h.b16 %v246
    %v637 = vunpack.c.l.b16 %v247
    %v638 = vunpack.c.h.b16 %v247
    %v639 = vpack.c.b16 %v391, %v383
    %v640 = vpack.c.b16 %v392, %v384
    %v641 = vpack.c.b16 %v393, %v385
    %v642 = vpack.c.b16 %v394, %v386
    %v643 = vpack.c.b16 %v395, %v387
    %v644 = vpack.c.b16 %v396, %v388
    %v645 = vpack.c.b16 %v397, %v389
    %v646 = vpack.c.b16 %v398, %v390
    %v647 = vpack.c.b16 %v407, %v399
    %v648 = vpack.c.b16 %v408, %v400
    %v649 = vpack.c.b16 %v409, %v401
    %v650 = vpack.c.b16 %v410, %v402
    %v651 = vpack.c.b16 %v411, %v403
    %v652 = vpack.c.b16 %v412, %v404
    %v653 = vpack.c.b16 %v413, %v405
    %v654 = vpack.c.b16 %v414, %v406
    %v655 = vpack.c.b16 %v423, %v415
    %v656 = vpack.c.b16 %v424, %v416
    %v657 = vpack.c.b16 %v425, %v417
    %v658 = vpack.c.b16 %v426, %v418
    %v659 = vpack.c.b16 %v427, %v419
    %v660 = vpack.c.b16 %v428, %v420
    %v661 = vpack.c.b16 %v429, %v421
    %v662 = vpack.c.b16 %v430, %v422
    %v663 = vpack.c.b16 %v439, %v431
    %v664 = vpack.c.b16 %v440, %v432
    %v665 = vpack.c.b16 %v441, %v433
    %v666 = vpack.c.b16 %v442, %v434
    %v667 = vpack.c.b16 %v443, %v435
    %v668 = vpack.c.b16 %v444, %v436
    %v669 = vpack.c.b16 %v445, %v437
    %v670 = vpack.c.b16 %v446, %v438
    %v671 = vpack.c.b16 %v455, %v447
    %v672 = vpack.c.b16 %v456, %v448
    %v673 = vpack.c.b16 %v457, %v449
    %v674 = vpack.c.b16 %v458, %v450
    %v675 = vpack.c.b16 %v459, %v451
    %v676 = vpack.c.b16 %v460, %v452
    %v677 = vpack.c.b16 %v461, %v453
    %v678 = vpack.c.b16 %v462, %v454
    %v679 = vpack.c.b16 %v471, %v463
    %v680 = vpack.c.b16 %v472, %v464
    %v681 = vpack.c.b16 %v473, %v465
    %v682 = vpack.c.b16 %v474, %v466
    %v683 = vpack.c.b16 %v475, %v467
    %v684 = vpack.c.b16 %v476, %v468
    %v685 = vpack.c.b16 %v477, %v469
    %v686 = vpack.c.b16 %v478, %v470
    %v687 = vpack.c.b16 %v487, %v479
    %v688 = vpack.c.b16 %v488, %v480
    %v689 = vpack.c.b16 %v489, %v481
    %v690 = vpack.c.b16 %v490, %v482
    %v691 = vpack.c.b16 %v491, %v483
    %v692 = vpack.c.b16 %v492, %v484
    %v693 = vpack.c.b16 %v493, %v485
    %v694 = vpack.c.b16 %v494, %v486
    %v695 = vpack.c.b16 %v503, %v495
    %v696 = vpack.c.b16 %v504, %v496
    %v697 = vpack.c.b16 %v505, %v497
    %v698 = vpack.c.b16 %v506, %v498
    %v699 = vpack.c.b16 %v507, %v499
    %v700 = vpack.c.b16 %v508, %v500
    %v701 = vpack.c.b16 %v509, %v501
    %v702 = vpack.c.b16 %v510, %v502
    %v703 = vpack.c.b16 %v519, %v511
    %v704 = vpack.c.b16 %v520, %v512
    %v705 = vpack.c.b16 %v521, %v513
    %v706 = vpack.c.b16 %v522, %v514
    %v707 = vpack.c.b16 %v523, %v515
    %v708 = vpack.c.b16 %v524, %v516
    %v709 = vpack.c.b16 %v525, %v517
    %v710 = vpack.c.b16 %v526, %v518
    %v711 = vpack.c.b16 %v535, %v527
    %v712 = vpack.c.b16 %v536, %v528
    %v713 = vpack.c.b16 %v537, %v529
    %v714 = vpack.c.b16 %v538, %v530
    %v715 = vpack.c.b16 %v539, %v531
    %v716 = vpack.c.b16 %v540, %v532
    %v717 = vpack.c.b16 %v541, %v533
    %v718 = vpack.c.b16 %v542, %v534
    %v719 = vpack.c.b16 %v551, %v543
    %v720 = vpack.c.b16 %v552, %v544
    %v721 = vpack.c.b16 %v553, %v545
    %v722 = vpack.c.b16 %v554, %v546
    %v723 = vpack.c.b16 %v555, %v547
    %v724 = vpack.c.b16 %v556, %v548
    %v725 = vpack.c.b16 %v557, %v549
    %v726 = vpack.c.b16 %v558, %v550
    %v727 = vpack.c.b16 %v567, %v559
    %v728 = vpack.c.b16 %v568, %v560
    %v729 = vpack.c.b16 %v569, %v561
    %v730 = vpack.c.b16 %v570, %v562
    %v731 = vpack.c.b16 %v571, %v563
    %v732 = vpack.c.b16 %v572, %v564
    %v733 = vpack.c.b16 %v573, %v565
    %v734 = vpack.c.b16 %v574, %v566
    %v735 = vpack.c.b16 %v583, %v575
    %v736 = vpack.c.b16 %v584, %v576
    %v737 = vpack.c.b16 %v585, %v577
    %v738 = vpack.c.b16 %v586, %v578
    %v739 = vpack.c.b16 %v587, %v579
    %v740 = vpack.c.b16 %v588, %v580
    %v741 = vpack.c.b16 %v589, %v581
    %v742 = vpack.c.b16 %v590, %v582
    %v743 = vpack.c.b16 %v599, %v591
    %v744 = vpack.c.b16 %v600, %v592
    %v745 = vpack.c.b16 %v601, %v593
    %v746 = vpack.c.b16 %v602, %v594
    %v747 = vpack.c.b16 %v603, %v595
    %v748 = vpack.c.b16 %v604, %v596
    %v749 = vpack.c.b16 %v605, %v597
    %v750 = vpack.c.b16 %v606, %v598
    %v751 = vpack.c.b16 %v615, %v607
    %v752 = vpack.c.b16 %v616, %v608
    %v753 = vpack.c.b16 %v617, %v609
    %v754 = vpack.c.b16 %v618, %v610
    %v755 = vpack.c.b16 %v619, %v611
    %v756 = vpack.c.b16 %v620, %v612
    %v757 = vpack.c.b16 %v621, %v613
    %v758 = vpack.c.b16 %v622, %v614
    %v759 = vpack.c.b16 %v631, %v623
    %v760 = vpack.c.b16 %v632, %v624
    %v761 = vpack.c.b16 %v633, %v625
    %v762 = vpack.c.b16 %v634, %v626
    %v763 = vpack.c.b16 %v635, %v627
    %v764 = vpack.c.b16 %v636, %v628
    %v765 = vpack.c.b16 %v637, %v629
    %v766 = vpack.c.b16 %v638, %v630
    %895 = vmatprep.subr.bf16.mxu0 %v696
    %896 = vmatpush1.bf16.msra.mxu0 %v695
    %897 = vmatprep.subr.bf16.mxu0 %v688
    %898 = vmatpush1.bf16.msra.mxu0 %v687
    %899 = vmatprep.subr.bf16.mxu0 %v680
    %900 = vmatpush1.bf16.msra.mxu0 %v679
    %901 = vmatprep.subr.bf16.mxu0 %v672
    %902 = vmatpush1.bf16.msra.mxu0 %v671
    %903 = vmatprep.subr.bf16.mxu0 %v664
    %904 = vmatpush1.bf16.msra.mxu0 %v663
    %905 = vmatprep.subr.bf16.mxu0 %v656
    %906 = vmatpush1.bf16.msra.mxu0 %v655
    %907 = vmatprep.subr.bf16.mxu0 %v648
    %908 = vmatpush1.bf16.msra.mxu0 %v647
    %909 = vmatprep.subr.bf16.mxu0 %v640
    %910 = vmatpush1.bf16.msra.mxu0 %v639
    %911 = vmatprep.subr.bf16.mxu0 %v760
    %912 = vmatpush2.bf16.msra.mxu0 %v759
    %913 = vmatprep.subr.bf16.mxu0 %v752
    %914 = vmatpush2.bf16.msra.mxu0 %v751
    %915 = vmatprep.subr.bf16.mxu0 %v744
    %916 = vmatpush2.bf16.msra.mxu0 %v743
    %917 = vmatprep.subr.bf16.mxu0 %v736
    %918 = vmatpush2.bf16.msra.mxu0 %v735
    %919 = vmatprep.subr.bf16.mxu0 %v728
    %920 = vmatpush2.bf16.msra.mxu0 %v727
    %921 = vmatprep.subr.bf16.mxu0 %v720
    %922 = vmatpush2.bf16.msra.mxu0 %v719
    %923 = vmatprep.subr.bf16.mxu0 %v712
    %924 = vmatpush2.bf16.msra.mxu0 %v711
    %925 = vmatprep.subr.bf16.mxu0 %v704
    %926 = vmatpush2.bf16.msra.mxu0 %v703
    %927 = vmatprep.mubr.bf16.mxu0 %v252
    %928 = vmatmul.mubr.bf16.gmra.mxu0 %v251
    %v929 = vpop.f32.mrf.mxu0
    %v930 = vadd.f32 0.0, %v929
    %v931 = vpop.f32.mrf.mxu0
    %v932 = vadd.f32 0.0, %v931
    %v933 = vpop.f32.mrf.mxu0
    %v934 = vpop.f32.mrf.mxu0
    %935 = vdwg.mxu0
    %936 = vmatprep.subr.bf16.mxu0 %v698
    %937 = vmatpush1.bf16.msra.mxu0 %v697
    %938 = vmatprep.subr.bf16.mxu0 %v690
    %939 = vmatpush1.bf16.msra.mxu0 %v689
    %940 = vmatprep.subr.bf16.mxu0 %v682
    %941 = vmatpush1.bf16.msra.mxu0 %v681
    %942 = vmatprep.subr.bf16.mxu0 %v674
    %943 = vmatpush1.bf16.msra.mxu0 %v673
    %944 = vmatprep.subr.bf16.mxu0 %v666
    %945 = vmatpush1.bf16.msra.mxu0 %v665
    %946 = vmatprep.subr.bf16.mxu0 %v658
    %947 = vmatpush1.bf16.msra.mxu0 %v657
    %948 = vmatprep.subr.bf16.mxu0 %v650
    %949 = vmatpush1.bf16.msra.mxu0 %v649
    %950 = vmatprep.subr.bf16.mxu0 %v642
    %951 = vmatpush1.bf16.msra.mxu0 %v641
    %952 = vmatprep.subr.bf16.mxu0 %v762
    %953 = vmatpush2.bf16.msra.mxu0 %v761
    %954 = vmatprep.subr.bf16.mxu0 %v754
    %955 = vmatpush2.bf16.msra.mxu0 %v753
    %956 = vmatprep.subr.bf16.mxu0 %v746
    %957 = vmatpush2.bf16.msra.mxu0 %v745
    %958 = vmatprep.subr.bf16.mxu0 %v738
    %959 = vmatpush2.bf16.msra.mxu0 %v737
    %960 = vmatprep.subr.bf16.mxu0 %v730
    %961 = vmatpush2.bf16.msra.mxu0 %v729
    %962 = vmatprep.subr.bf16.mxu0 %v722
    %963 = vmatpush2.bf16.msra.mxu0 %v721
    %964 = vmatprep.subr.bf16.mxu0 %v714
    %965 = vmatpush2.bf16.msra.mxu0 %v713
    %966 = vmatprep.subr.bf16.mxu0 %v706
    %967 = vmatpush2.bf16.msra.mxu0 %v705
    %968 = vmatprep.mubr.bf16.mxu0 %v252
    %969 = vmatmul.mubr.bf16.gmra.mxu0 %v251
    %v970 = vpop.f32.mrf.mxu0
    %v971 = vadd.f32 0.0, %v970
    %v972 = vpop.f32.mrf.mxu0
    %v973 = vadd.f32 0.0, %v972
    %v974 = vpop.f32.mrf.mxu0
    %v975 = vpop.f32.mrf.mxu0
    %976 = vdwg.mxu0
    %977 = vmatprep.subr.bf16.mxu0 %v700
    %978 = vmatpush1.bf16.msra.mxu0 %v699
    %979 = vmatprep.subr.bf16.mxu0 %v692
    %980 = vmatpush1.bf16.msra.mxu0 %v691
    %981 = vmatprep.subr.bf16.mxu0 %v684
    %982 = vmatpush1.bf16.msra.mxu0 %v683
    %983 = vmatprep.subr.bf16.mxu0 %v676
    %984 = vmatpush1.bf16.msra.mxu0 %v675
    %985 = vmatprep.subr.bf16.mxu0 %v668
    %986 = vmatpush1.bf16.msra.mxu0 %v667
    %987 = vmatprep.subr.bf16.mxu0 %v660
    %988 = vmatpush1.bf16.msra.mxu0 %v659
    %989 = vmatprep.subr.bf16.mxu0 %v652
    %990 = vmatpush1.bf16.msra.mxu0 %v651
    %991 = vmatprep.subr.bf16.mxu0 %v644
    %992 = vmatpush1.bf16.msra.mxu0 %v643
    %993 = vmatprep.subr.bf16.mxu0 %v764
    %994 = vmatpush2.bf16.msra.mxu0 %v763
    %995 = vmatprep.subr.bf16.mxu0 %v756
    %996 = vmatpush2.bf16.msra.mxu0 %v755
    %997 = vmatprep.subr.bf16.mxu0 %v748
    %998 = vmatpush2.bf16.msra.mxu0 %v747
    %999 = vmatprep.subr.bf16.mxu0 %v740
    %1000 = vmatpush2.bf16.msra.mxu0 %v739
    %1001 = vmatprep.subr.bf16.mxu0 %v732
    %1002 = vmatpush2.bf16.msra.mxu0 %v731
    %1003 = vmatprep.subr.bf16.mxu0 %v724
    %1004 = vmatpush2.bf16.msra.mxu0 %v723
    %1005 = vmatprep.subr.bf16.mxu0 %v716
    %1006 = vmatpush2.bf16.msra.mxu0 %v715
    %1007 = vmatprep.subr.bf16.mxu0 %v708
    %1008 = vmatpush2.bf16.msra.mxu0 %v707
    %1009 = vmatprep.mubr.bf16.mxu0 %v252
    %1010 = vmatmul.mubr.bf16.gmra.mxu0 %v251
    %v1011 = vpop.f32.mrf.mxu0
    %v1012 = vadd.f32 0.0, %v1011
    %v1013 = vpop.f32.mrf.mxu0
    %v1014 = vadd.f32 0.0, %v1013
    %v1015 = vpop.f32.mrf.mxu0
    %v1016 = vpop.f32.mrf.mxu0
    %1017 = vdwg.mxu0
    %1018 = vmatprep.subr.bf16.mxu0 %v702
    %1019 = vmatpush1.bf16.msra.mxu0 %v701
    %1020 = vmatprep.subr.bf16.mxu0 %v694
    %1021 = vmatpush1.bf16.msra.mxu0 %v693
    %1022 = vmatprep.subr.bf16.mxu0 %v686
    %1023 = vmatpush1.bf16.msra.mxu0 %v685
    %1024 = vmatprep.subr.bf16.mxu0 %v678
    %1025 = vmatpush1.bf16.msra.mxu0 %v677
    %1026 = vmatprep.subr.bf16.mxu0 %v670
    %1027 = vmatpush1.bf16.msra.mxu0 %v669
    %1028 = vmatprep.subr.bf16.mxu0 %v662
    %1029 = vmatpush1.bf16.msra.mxu0 %v661
    %1030 = vmatprep.subr.bf16.mxu0 %v654
    %1031 = vmatpush1.bf16.msra.mxu0 %v653
    %1032 = vmatprep.subr.bf16.mxu0 %v646
    %1033 = vmatpush1.bf16.msra.mxu0 %v645
    %1034 = vmatprep.subr.bf16.mxu0 %v766
    %1035 = vmatpush2.bf16.msra.mxu0 %v765
    %1036 = vmatprep.subr.bf16.mxu0 %v758
    %1037 = vmatpush2.bf16.msra.mxu0 %v757
    %1038 = vmatprep.subr.bf16.mxu0 %v750
    %1039 = vmatpush2.bf16.msra.mxu0 %v749
    %1040 = vmatprep.subr.bf16.mxu0 %v742
    %1041 = vmatpush2.bf16.msra.mxu0 %v741
    %1042 = vmatprep.subr.bf16.mxu0 %v734
    %1043 = vmatpush2.bf16.msra.mxu0 %v733
    %1044 = vmatprep.subr.bf16.mxu0 %v726
    %1045 = vmatpush2.bf16.msra.mxu0 %v725
    %1046 = vmatprep.subr.bf16.mxu0 %v718
    %1047 = vmatpush2.bf16.msra.mxu0 %v717
    %1048 = vmatprep.subr.bf16.mxu0 %v710
    %1049 = vmatpush2.bf16.msra.mxu0 %v709
    %1050 = vmatprep.mubr.bf16.mxu0 %v252
    %1051 = vmatmul.mubr.bf16.gmra.mxu0 %v251
    %v1052 = vpop.f32.mrf.mxu0
    %v1053 = vadd.f32 0.0, %v1052
    %v1054 = vpop.f32.mrf.mxu0
    %v1055 = vadd.f32 0.0, %v1054
    %v1056 = vpop.f32.mrf.mxu0
    %v1057 = vpop.f32.mrf.mxu0
    %1058 = vdwg.mxu0
    %v1059 = vadd.f32 %v930, %v971
    %v1060 = vadd.f32 %v932, %v973
    %v1061 = vadd.f32 %v1059, %v1012
    %v1062 = vadd.f32 %v1060, %v1014
    %v1063 = vadd.f32 %v1061, %v1053
    %v1064 = vadd.f32 %v1062, %v1055
    %v1065 = vmul.f32 %v1063, 0.25
    %v1066 = vmul.f32 %v1064, 0.25
    %v1067 = vpack.c.bf16 %v1065, %v1065
    %v1068 = vpack.c.bf16 %v1066, %v1066
    %v1069 = vld [vmem:[#allocation8] sm:$0xff]
    %v1070 = vld [vmem:[#allocation8 + $0x8] sm:$0xff]
    %v1071 = vld [vmem:[#allocation8 + $0x10] sm:$0xff]
    %v1072 = vld [vmem:[#allocation8 + $0x18] sm:$0xff]
    %v1073 = vld [vmem:[#allocation8 + $0x20] sm:$0xff]
    %v1074 = vld [vmem:[#allocation8 + $0x28] sm:$0xff]
    %v1075 = vld [vmem:[#allocation8 + $0x30] sm:$0xff]
    %v1076 = vld [vmem:[#allocation8 + $0x38] sm:$0xff]
    %v1077 = vld [vmem:[#allocation8 + $0x40] sm:$0xff]
    %v1078 = vld [vmem:[#allocation8 + $0x48] sm:$0xff]
    %v1079 = vld [vmem:[#allocation8 + $0x50] sm:$0xff]
    %v1080 = vld [vmem:[#allocation8 + $0x58] sm:$0xff]
    %v1081 = vld [vmem:[#allocation8 + $0x60] sm:$0xff]
    %v1082 = vld [vmem:[#allocation8 + $0x68] sm:$0xff]
    %v1083 = vld [vmem:[#allocation8 + $0x70] sm:$0xff]
    %v1084 = vld [vmem:[#allocation8 + $0x78] sm:$0xff]
    %v1085 = vld [vmem:[#allocation8 + $0x80] sm:$0xff]
    %v1086 = vld [vmem:[#allocation8 + $0x88] sm:$0xff]
    %v1087 = vld [vmem:[#allocation8 + $0x90] sm:$0xff]
    %v1088 = vld [vmem:[#allocation8 + $0x98] sm:$0xff]
    %v1089 = vld [vmem:[#allocation8 + $0xa0] sm:$0xff]
    %v1090 = vld [vmem:[#allocation8 + $0xa8] sm:$0xff]
    %v1091 = vld [vmem:[#allocation8 + $0xb0] sm:$0xff]
    %v1092 = vld [vmem:[#allocation8 + $0xb8] sm:$0xff]
    %v1093 = vld [vmem:[#allocation8 + $0xc0] sm:$0xff]
    %v1094 = vld [vmem:[#allocation8 + $0xc8] sm:$0xff]
    %v1095 = vld [vmem:[#allocation8 + $0xd0] sm:$0xff]
    %v1096 = vld [vmem:[#allocation8 + $0xd8] sm:$0xff]
    %v1097 = vld [vmem:[#allocation8 + $0xe0] sm:$0xff]
    %v1098 = vld [vmem:[#allocation8 + $0xe8] sm:$0xff]
    %v1099 = vld [vmem:[#allocation8 + $0xf0] sm:$0xff]
    %v1100 = vld [vmem:[#allocation8 + $0xf8] sm:$0xff]
    %v1101 = vld [vmem:[#allocation8 + $0x100] sm:$0xff]
    %v1102 = vld [vmem:[#allocation8 + $0x108] sm:$0xff]
    %v1103 = vld [vmem:[#allocation8 + $0x110] sm:$0xff]
    %v1104 = vld [vmem:[#allocation8 + $0x118] sm:$0xff]
    %v1105 = vld [vmem:[#allocation8 + $0x120] sm:$0xff]
    %v1106 = vld [vmem:[#allocation8 + $0x128] sm:$0xff]
    %v1107 = vld [vmem:[#allocation8 + $0x130] sm:$0xff]
    %v1108 = vld [vmem:[#allocation8 + $0x138] sm:$0xff]
    %v1109 = vld [vmem:[#allocation8 + $0x140] sm:$0xff]
    %v1110 = vld [vmem:[#allocation8 + $0x148] sm:$0xff]
    %v1111 = vld [vmem:[#allocation8 + $0x150] sm:$0xff]
    %v1112 = vld [vmem:[#allocation8 + $0x158] sm:$0xff]
    %v1113 = vld [vmem:[#allocation8 + $0x160] sm:$0xff]
    %v1114 = vld [vmem:[#allocation8 + $0x168] sm:$0xff]
    %v1115 = vld [vmem:[#allocation8 + $0x170] sm:$0xff]
    %v1116 = vld [vmem:[#allocation8 + $0x178] sm:$0xff]
    %v1117 = vld [vmem:[#allocation8 + $0x180] sm:$0xff]
    %v1118 = vld [vmem:[#allocation8 + $0x188] sm:$0xff]
    %v1119 = vld [vmem:[#allocation8 + $0x190] sm:$0xff]
    %v1120 = vld [vmem:[#allocation8 + $0x198] sm:$0xff]
    %v1121 = vld [vmem:[#allocation8 + $0x1a0] sm:$0xff]
    %v1122 = vld [vmem:[#allocation8 + $0x1a8] sm:$0xff]
    %v1123 = vld [vmem:[#allocation8 + $0x1b0] sm:$0xff]
    %v1124 = vld [vmem:[#allocation8 + $0x1b8] sm:$0xff]
    %v1125 = vld [vmem:[#allocation8 + $0x1c0] sm:$0xff]
    %v1126 = vld [vmem:[#allocation8 + $0x1c8] sm:$0xff]
    %v1127 = vld [vmem:[#allocation8 + $0x1d0] sm:$0xff]
    %v1128 = vld [vmem:[#allocation8 + $0x1d8] sm:$0xff]
    %v1129 = vld [vmem:[#allocation8 + $0x1e0] sm:$0xff]
    %v1130 = vld [vmem:[#allocation8 + $0x1e8] sm:$0xff]
    %v1131 = vld [vmem:[#allocation8 + $0x1f0] sm:$0xff]
    %v1132 = vld [vmem:[#allocation8 + $0x1f8] sm:$0xff]
    %v1197 = vunpack.c.l.b16 %v1069
    %v1198 = vunpack.c.h.b16 %v1069
    %v1199 = vunpack.c.l.b16 %v1070
    %v1200 = vunpack.c.h.b16 %v1070
    %v1201 = vunpack.c.l.b16 %v1071
    %v1202 = vunpack.c.h.b16 %v1071
    %v1203 = vunpack.c.l.b16 %v1072
    %v1204 = vunpack.c.h.b16 %v1072
    %v1205 = vunpack.c.l.b16 %v1073
    %v1206 = vunpack.c.h.b16 %v1073
    %v1207 = vunpack.c.l.b16 %v1074
    %v1208 = vunpack.c.h.b16 %v1074
    %v1209 = vunpack.c.l.b16 %v1075
    %v1210 = vunpack.c.h.b16 %v1075
    %v1211 = vunpack.c.l.b16 %v1076
    %v1212 = vunpack.c.h.b16 %v1076
    %v1213 = vunpack.c.l.b16 %v1077
    %v1214 = vunpack.c.h.b16 %v1077
    %v1215 = vunpack.c.l.b16 %v1078
    %v1216 = vunpack.c.h.b16 %v1078
    %v1217 = vunpack.c.l.b16 %v1079
    %v1218 = vunpack.c.h.b16 %v1079
    %v1219 = vunpack.c.l.b16 %v1080
    %v1220 = vunpack.c.h.b16 %v1080
    %v1221 = vunpack.c.l.b16 %v1081
    %v1222 = vunpack.c.h.b16 %v1081
    %v1223 = vunpack.c.l.b16 %v1082
    %v1224 = vunpack.c.h.b16 %v1082
    %v1225 = vunpack.c.l.b16 %v1083
    %v1226 = vunpack.c.h.b16 %v1083
    %v1227 = vunpack.c.l.b16 %v1084
    %v1228 = vunpack.c.h.b16 %v1084
    %v1229 = vunpack.c.l.b16 %v1085
    %v1230 = vunpack.c.h.b16 %v1085
    %v1231 = vunpack.c.l.b16 %v1086
    %v1232 = vunpack.c.h.b16 %v1086
    %v1233 = vunpack.c.l.b16 %v1087
    %v1234 = vunpack.c.h.b16 %v1087
    %v1235 = vunpack.c.l.b16 %v1088
    %v1236 = vunpack.c.h.b16 %v1088
    %v1237 = vunpack.c.l.b16 %v1089
    %v1238 = vunpack.c.h.b16 %v1089
    %v1239 = vunpack.c.l.b16 %v1090
    %v1240 = vunpack.c.h.b16 %v1090
    %v1241 = vunpack.c.l.b16 %v1091
    %v1242 = vunpack.c.h.b16 %v1091
    %v1243 = vunpack.c.l.b16 %v1092
    %v1244 = vunpack.c.h.b16 %v1092
    %v1245 = vunpack.c.l.b16 %v1093
    %v1246 = vunpack.c.h.b16 %v1093
    %v1247 = vunpack.c.l.b16 %v1094
    %v1248 = vunpack.c.h.b16 %v1094
    %v1249 = vunpack.c.l.b16 %v1095
    %v1250 = vunpack.c.h.b16 %v1095
    %v1251 = vunpack.c.l.b16 %v1096
    %v1252 = vunpack.c.h.b16 %v1096
    %v1253 = vunpack.c.l.b16 %v1097
    %v1254 = vunpack.c.h.b16 %v1097
    %v1255 = vunpack.c.l.b16 %v1098
    %v1256 = vunpack.c.h.b16 %v1098
    %v1257 = vunpack.c.l.b16 %v1099
    %v1258 = vunpack.c.h.b16 %v1099
    %v1259 = vunpack.c.l.b16 %v1100
    %v1260 = vunpack.c.h.b16 %v1100
    %v1261 = vunpack.c.l.b16 %v1101
    %v1262 = vunpack.c.h.b16 %v1101
    %v1263 = vunpack.c.l.b16 %v1102
    %v1264 = vunpack.c.h.b16 %v1102
    %v1265 = vunpack.c.l.b16 %v1103
    %v1266 = vunpack.c.h.b16 %v1103
    %v1267 = vunpack.c.l.b16 %v1104
    %v1268 = vunpack.c.h.b16 %v1104
    %v1269 = vunpack.c.l.b16 %v1105
    %v1270 = vunpack.c.h.b16 %v1105
    %v1271 = vunpack.c.l.b16 %v1106
    %v1272 = vunpack.c.h.b16 %v1106
    %v1273 = vunpack.c.l.b16 %v1107
    %v1274 = vunpack.c.h.b16 %v1107
    %v1275 = vunpack.c.l.b16 %v1108
    %v1276 = vunpack.c.h.b16 %v1108
    %v1277 = vunpack.c.l.b16 %v1109
    %v1278 = vunpack.c.h.b16 %v1109
    %v1279 = vunpack.c.l.b16 %v1110
    %v1280 = vunpack.c.h.b16 %v1110
    %v1281 = vunpack.c.l.b16 %v1111
    %v1282 = vunpack.c.h.b16 %v1111
    %v1283 = vunpack.c.l.b16 %v1112
    %v1284 = vunpack.c.h.b16 %v1112
    %v1285 = vunpack.c.l.b16 %v1113
    %v1286 = vunpack.c.h.b16 %v1113
    %v1287 = vunpack.c.l.b16 %v1114
    %v1288 = vunpack.c.h.b16 %v1114
    %v1289 = vunpack.c.l.b16 %v1115
    %v1290 = vunpack.c.h.b16 %v1115
    %v1291 = vunpack.c.l.b16 %v1116
    %v1292 = vunpack.c.h.b16 %v1116
    %v1293 = vunpack.c.l.b16 %v1117
    %v1294 = vunpack.c.h.b16 %v1117
    %v1295 = vunpack.c.l.b16 %v1118
    %v1296 = vunpack.c.h.b16 %v1118
    %v1297 = vunpack.c.l.b16 %v1119
    %v1298 = vunpack.c.h.b16 %v1119
    %v1299 = vunpack.c.l.b16 %v1120
    %v1300 = vunpack.c.h.b16 %v1120
    %v1301 = vunpack.c.l.b16 %v1121
    %v1302 = vunpack.c.h.b16 %v1121
    %v1303 = vunpack.c.l.b16 %v1122
    %v1304 = vunpack.c.h.b16 %v1122
    %v1305 = vunpack.c.l.b16 %v1123
    %v1306 = vunpack.c.h.b16 %v1123
    %v1307 = vunpack.c.l.b16 %v1124
    %v1308 = vunpack.c.h.b16 %v1124
    %v1309 = vunpack.c.l.b16 %v1125
    %v1310 = vunpack.c.h.b16 %v1125
    %v1311 = vunpack.c.l.b16 %v1126
    %v1312 = vunpack.c.h.b16 %v1126
    %v1313 = vunpack.c.l.b16 %v1127
    %v1314 = vunpack.c.h.b16 %v1127
    %v1315 = vunpack.c.l.b16 %v1128
    %v1316 = vunpack.c.h.b16 %v1128
    %v1317 = vunpack.c.l.b16 %v1129
    %v1318 = vunpack.c.h.b16 %v1129
    %v1319 = vunpack.c.l.b16 %v1130
    %v1320 = vunpack.c.h.b16 %v1130
    %v1321 = vunpack.c.l.b16 %v1131
    %v1322 = vunpack.c.h.b16 %v1131
    %v1323 = vunpack.c.l.b16 %v1132
    %v1324 = vunpack.c.h.b16 %v1132
    %v1325 = vpack.c.b16 %v1201, %v1197
    %v1326 = vpack.c.b16 %v1202, %v1198
    %v1327 = vpack.c.b16 %v1203, %v1199
    %v1328 = vpack.c.b16 %v1204, %v1200
    %v1329 = vpack.c.b16 %v1209, %v1205
    %v1330 = vpack.c.b16 %v1210, %v1206
    %v1331 = vpack.c.b16 %v1211, %v1207
    %v1332 = vpack.c.b16 %v1212, %v1208
    %v1333 = vpack.c.b16 %v1217, %v1213
    %v1334 = vpack.c.b16 %v1218, %v1214
    %v1335 = vpack.c.b16 %v1219, %v1215
    %v1336 = vpack.c.b16 %v1220, %v1216
    %v1337 = vpack.c.b16 %v1225, %v1221
    %v1338 = vpack.c.b16 %v1226, %v1222
    %v1339 = vpack.c.b16 %v1227, %v1223
    %v1340 = vpack.c.b16 %v1228, %v1224
    %v1341 = vpack.c.b16 %v1233, %v1229
    %v1342 = vpack.c.b16 %v1234, %v1230
    %v1343 = vpack.c.b16 %v1235, %v1231
    %v1344 = vpack.c.b16 %v1236, %v1232
    %v1345 = vpack.c.b16 %v1241, %v1237
    %v1346 = vpack.c.b16 %v1242, %v1238
    %v1347 = vpack.c.b16 %v1243, %v1239
    %v1348 = vpack.c.b16 %v1244, %v1240
    %v1349 = vpack.c.b16 %v1249, %v1245
    %v1350 = vpack.c.b16 %v1250, %v1246
    %v1351 = vpack.c.b16 %v1251, %v1247
    %v1352 = vpack.c.b16 %v1252, %v1248
    %v1353 = vpack.c.b16 %v1257, %v1253
    %v1354 = vpack.c.b16 %v1258, %v1254
    %v1355 = vpack.c.b16 %v1259, %v1255
    %v1356 = vpack.c.b16 %v1260, %v1256
    %v1357 = vpack.c.b16 %v1265, %v1261
    %v1358 = vpack.c.b16 %v1266, %v1262
    %v1359 = vpack.c.b16 %v1267, %v1263
    %v1360 = vpack.c.b16 %v1268, %v1264
    %v1361 = vpack.c.b16 %v1273, %v1269
    %v1362 = vpack.c.b16 %v1274, %v1270
    %v1363 = vpack.c.b16 %v1275, %v1271
    %v1364 = vpack.c.b16 %v1276, %v1272
    %v1365 = vpack.c.b16 %v1281, %v1277
    %v1366 = vpack.c.b16 %v1282, %v1278
    %v1367 = vpack.c.b16 %v1283, %v1279
    %v1368 = vpack.c.b16 %v1284, %v1280
    %v1369 = vpack.c.b16 %v1289, %v1285
    %v1370 = vpack.c.b16 %v1290, %v1286
    %v1371 = vpack.c.b16 %v1291, %v1287
    %v1372 = vpack.c.b16 %v1292, %v1288
    %v1373 = vpack.c.b16 %v1297, %v1293
    %v1374 = vpack.c.b16 %v1298, %v1294
    %v1375 = vpack.c.b16 %v1299, %v1295
    %v1376 = vpack.c.b16 %v1300, %v1296
    %v1377 = vpack.c.b16 %v1305, %v1301
    %v1378 = vpack.c.b16 %v1306, %v1302
    %v1379 = vpack.c.b16 %v1307, %v1303
    %v1380 = vpack.c.b16 %v1308, %v1304
    %v1381 = vpack.c.b16 %v1313, %v1309
    %v1382 = vpack.c.b16 %v1314, %v1310
    %v1383 = vpack.c.b16 %v1315, %v1311
    %v1384 = vpack.c.b16 %v1316, %v1312
    %v1385 = vpack.c.b16 %v1321, %v1317
    %v1386 = vpack.c.b16 %v1322, %v1318
    %v1387 = vpack.c.b16 %v1323, %v1319
    %v1388 = vpack.c.b16 %v1324, %v1320
    %1453 = vmatprep.subr.bf16.mxu0 %v1354
    %1454 = vmatpush1.bf16.msra.mxu0 %v1353
    %1455 = vmatprep.subr.bf16.mxu0 %v1350
    %1456 = vmatpush1.bf16.msra.mxu0 %v1349
    %1457 = vmatprep.subr.bf16.mxu0 %v1346
    %1458 = vmatpush1.bf16.msra.mxu0 %v1345
    %1459 = vmatprep.subr.bf16.mxu0 %v1342
    %1460 = vmatpush1.bf16.msra.mxu0 %v1341
    %1461 = vmatprep.subr.bf16.mxu0 %v1338
    %1462 = vmatpush1.bf16.msra.mxu0 %v1337
    %1463 = vmatprep.subr.bf16.mxu0 %v1334
    %1464 = vmatpush1.bf16.msra.mxu0 %v1333
    %1465 = vmatprep.subr.bf16.mxu0 %v1330
    %1466 = vmatpush1.bf16.msra.mxu0 %v1329
    %1467 = vmatprep.subr.bf16.mxu0 %v1326
    %1468 = vmatpush1.bf16.msra.mxu0 %v1325
    %1469 = vmatprep.subr.bf16.mxu0 %v1386
    %1470 = vmatpush2.bf16.msra.mxu0 %v1385
    %1471 = vmatprep.subr.bf16.mxu0 %v1382
    %1472 = vmatpush2.bf16.msra.mxu0 %v1381
    %1473 = vmatprep.subr.bf16.mxu0 %v1378
    %1474 = vmatpush2.bf16.msra.mxu0 %v1377
    %1475 = vmatprep.subr.bf16.mxu0 %v1374
    %1476 = vmatpush2.bf16.msra.mxu0 %v1373
    %1477 = vmatprep.subr.bf16.mxu0 %v1370
    %1478 = vmatpush2.bf16.msra.mxu0 %v1369
    %1479 = vmatprep.subr.bf16.mxu0 %v1366
    %1480 = vmatpush2.bf16.msra.mxu0 %v1365
    %1481 = vmatprep.subr.bf16.mxu0 %v1362
    %1482 = vmatpush2.bf16.msra.mxu0 %v1361
    %1483 = vmatprep.subr.bf16.mxu0 %v1358
    %1484 = vmatpush2.bf16.msra.mxu0 %v1357
    %1485 = vmatprep.mubr.bf16.mxu0 %v1068
    %1486 = vmatmul.mubr.bf16.gmra.mxu0 %v1067
    %v1487 = vpop.f32.mrf.mxu0
    %v1488 = vadd.f32 0.0, %v1487
    %v1489 = vpop.f32.mrf.mxu0
    %v1490 = vadd.f32 0.0, %v1489
    %v1491 = vpop.f32.mrf.mxu0
    %v1492 = vpop.f32.mrf.mxu0
    %1493 = vdwg.mxu0
    %1494 = vmatprep.subr.bf16.mxu0 %v1356
    %1495 = vmatpush1.bf16.msra.mxu0 %v1355
    %1496 = vmatprep.subr.bf16.mxu0 %v1352
    %1497 = vmatpush1.bf16.msra.mxu0 %v1351
    %1498 = vmatprep.subr.bf16.mxu0 %v1348
    %1499 = vmatpush1.bf16.msra.mxu0 %v1347
    %1500 = vmatprep.subr.bf16.mxu0 %v1344
    %1501 = vmatpush1.bf16.msra.mxu0 %v1343
    %1502 = vmatprep.subr.bf16.mxu0 %v1340
    %1503 = vmatpush1.bf16.msra.mxu0 %v1339
    %1504 = vmatprep.subr.bf16.mxu0 %v1336
    %1505 = vmatpush1.bf16.msra.mxu0 %v1335
    %1506 = vmatprep.subr.bf16.mxu0 %v1332
    %1507 = vmatpush1.bf16.msra.mxu0 %v1331
    %1508 = vmatprep.subr.bf16.mxu0 %v1328
    %1509 = vmatpush1.bf16.msra.mxu0 %v1327
    %1510 = vmatprep.subr.bf16.mxu0 %v1388
    %1511 = vmatpush2.bf16.msra.mxu0 %v1387
    %1512 = vmatprep.subr.bf16.mxu0 %v1384
    %1513 = vmatpush2.bf16.msra.mxu0 %v1383
    %1514 = vmatprep.subr.bf16.mxu0 %v1380
    %1515 = vmatpush2.bf16.msra.mxu0 %v1379
    %1516 = vmatprep.subr.bf16.mxu0 %v1376
    %1517 = vmatpush2.bf16.msra.mxu0 %v1375
    %1518 = vmatprep.subr.bf16.mxu0 %v1372
    %1519 = vmatpush2.bf16.msra.mxu0 %v1371
    %1520 = vmatprep.subr.bf16.mxu0 %v1368
    %1521 = vmatpush2.bf16.msra.mxu0 %v1367
    %1522 = vmatprep.subr.bf16.mxu0 %v1364
    %1523 = vmatpush2.bf16.msra.mxu0 %v1363
    %1524 = vmatprep.subr.bf16.mxu0 %v1360
    %1525 = vmatpush2.bf16.msra.mxu0 %v1359
    %1526 = vmatprep.mubr.bf16.mxu0 %v1068
    %1527 = vmatmul.mubr.bf16.gmra.mxu0 %v1067
    %v1528 = vpop.f32.mrf.mxu0
    %v1529 = vadd.f32 0.0, %v1528
    %v1530 = vpop.f32.mrf.mxu0
    %v1531 = vadd.f32 0.0, %v1530
    %v1532 = vpop.f32.mrf.mxu0
    %v1533 = vpop.f32.mrf.mxu0
    %1534 = vdwg.mxu0
    %s1535 = scalar_lea.vmem [#allocation13], 1
    %v1536 = vld [vmem:[%s1535] ss:$8 sm:$0x3]
    %v1538 = vlaneseq
    %v1539 = vshrl.u32 %v1538, 7
    %v1540 = vsub.s32 0, %v1539
    %v1541 = vrot.slane %v1536, %v1540
    %v1542 = vlaneseq
    %v1543 = vshrl.u32 %v1542, 7
    %v1544 = vsub.s32 1, %v1543
    %v1545 = vrot.slane %v1536, %v1544
    %v1548 = vadd.f32 %v1488, %v1541
    %v1549 = vadd.f32 %v1490, %v1545
    %s1550 = scalar_lea.vmem [#allocation13], 2
    %v1551 = vld [vmem:[%s1550] ss:$8 sm:$0x3]
    %v1553 = vlaneseq
    %v1554 = vshrl.u32 %v1553, 7
    %v1555 = vsub.s32 0, %v1554
    %v1556 = vrot.slane %v1551, %v1555
    %v1557 = vlaneseq
    %v1558 = vshrl.u32 %v1557, 7
    %v1559 = vsub.s32 1, %v1558
    %v1560 = vrot.slane %v1551, %v1559
    %v1563 = vadd.f32 %v1529, %v1556
    %v1564 = vadd.f32 %v1531, %v1560
    %v1565 = vld [vmem:[#allocation13] ss:$8 sm:$0x3]
    %v1566 = vld [vmem:[#allocation7] sm:$0xff]
    %v1567 = vld [vmem:[#allocation7 + $0x8] sm:$0xff]
    %v1568 = vld [vmem:[#allocation7 + $0x10] sm:$0xff]
    %v1569 = vld [vmem:[#allocation7 + $0x18] sm:$0xff]
    %v1570 = vld [vmem:[#allocation7 + $0x20] sm:$0xff]
    %v1571 = vld [vmem:[#allocation7 + $0x28] sm:$0xff]
    %v1572 = vld [vmem:[#allocation7 + $0x30] sm:$0xff]
    %v1573 = vld [vmem:[#allocation7 + $0x38] sm:$0xff]
    %v1574 = vld [vmem:[#allocation7 + $0x40] sm:$0xff]
    %v1575 = vld [vmem:[#allocation7 + $0x48] sm:$0xff]
    %v1576 = vld [vmem:[#allocation7 + $0x50] sm:$0xff]
    %v1577 = vld [vmem:[#allocation7 + $0x58] sm:$0xff]
    %v1578 = vld [vmem:[#allocation7 + $0x60] sm:$0xff]
    %v1579 = vld [vmem:[#allocation7 + $0x68] sm:$0xff]
    %v1580 = vld [vmem:[#allocation7 + $0x70] sm:$0xff]
    %v1581 = vld [vmem:[#allocation7 + $0x78] sm:$0xff]
    %v1582 = vld [vmem:[#allocation7 + $0x80] sm:$0xff]
    %v1583 = vld [vmem:[#allocation7 + $0x88] sm:$0xff]
    %v1584 = vld [vmem:[#allocation7 + $0x90] sm:$0xff]
    %v1585 = vld [vmem:[#allocation7 + $0x98] sm:$0xff]
    %v1586 = vld [vmem:[#allocation7 + $0xa0] sm:$0xff]
    %v1587 = vld [vmem:[#allocation7 + $0xa8] sm:$0xff]
    %v1588 = vld [vmem:[#allocation7 + $0xb0] sm:$0xff]
    %v1589 = vld [vmem:[#allocation7 + $0xb8] sm:$0xff]
    %v1590 = vld [vmem:[#allocation7 + $0xc0] sm:$0xff]
    %v1591 = vld [vmem:[#allocation7 + $0xc8] sm:$0xff]
    %v1592 = vld [vmem:[#allocation7 + $0xd0] sm:$0xff]
    %v1593 = vld [vmem:[#allocation7 + $0xd8] sm:$0xff]
    %v1594 = vld [vmem:[#allocation7 + $0xe0] sm:$0xff]
    %v1595 = vld [vmem:[#allocation7 + $0xe8] sm:$0xff]
    %v1596 = vld [vmem:[#allocation7 + $0xf0] sm:$0xff]
    %v1597 = vld [vmem:[#allocation7 + $0xf8] sm:$0xff]
    %v1598 = vld [vmem:[#allocation10] sm:$0xff]
    %v1599 = vld [vmem:[#allocation10 + $0x8] sm:$0xff]
    %v1600 = vld [vmem:[#allocation10 + $0x10] sm:$0xff]
    %v1601 = vld [vmem:[#allocation10 + $0x18] sm:$0xff]
    %v1602 = vld [vmem:[#allocation10 + $0x20] sm:$0xff]
    %v1603 = vld [vmem:[#allocation10 + $0x28] sm:$0xff]
    %v1604 = vld [vmem:[#allocation10 + $0x30] sm:$0xff]
    %v1605 = vld [vmem:[#allocation10 + $0x38] sm:$0xff]
    %v1606 = vld [vmem:[#allocation10 + $0x40] sm:$0xff]
    %v1607 = vld [vmem:[#allocation10 + $0x48] sm:$0xff]
    %v1608 = vld [vmem:[#allocation10 + $0x50] sm:$0xff]
    %v1609 = vld [vmem:[#allocation10 + $0x58] sm:$0xff]
    %v1610 = vld [vmem:[#allocation10 + $0x60] sm:$0xff]
    %v1611 = vld [vmem:[#allocation10 + $0x68] sm:$0xff]
    %v1612 = vld [vmem:[#allocation10 + $0x70] sm:$0xff]
    %v1613 = vld [vmem:[#allocation10 + $0x78] sm:$0xff]
    %v1614 = vld [vmem:[#allocation10 + $0x80] sm:$0xff]
    %v1615 = vld [vmem:[#allocation10 + $0x88] sm:$0xff]
    %v1616 = vld [vmem:[#allocation10 + $0x90] sm:$0xff]
    %v1617 = vld [vmem:[#allocation10 + $0x98] sm:$0xff]
    %v1618 = vld [vmem:[#allocation10 + $0xa0] sm:$0xff]
    %v1619 = vld [vmem:[#allocation10 + $0xa8] sm:$0xff]
    %v1620 = vld [vmem:[#allocation10 + $0xb0] sm:$0xff]
    %v1621 = vld [vmem:[#allocation10 + $0xb8] sm:$0xff]
    %v1622 = vld [vmem:[#allocation10 + $0xc0] sm:$0xff]
    %v1623 = vld [vmem:[#allocation10 + $0xc8] sm:$0xff]
    %v1624 = vld [vmem:[#allocation10 + $0xd0] sm:$0xff]
    %v1625 = vld [vmem:[#allocation10 + $0xd8] sm:$0xff]
    %v1626 = vld [vmem:[#allocation10 + $0xe0] sm:$0xff]
    %v1627 = vld [vmem:[#allocation10 + $0xe8] sm:$0xff]
    %v1628 = vld [vmem:[#allocation10 + $0xf0] sm:$0xff]
    %v1629 = vld [vmem:[#allocation10 + $0xf8] sm:$0xff]
    %v1630 = vld [vmem:[#allocation10 + $0x100] sm:$0xff]
    %v1631 = vld [vmem:[#allocation10 + $0x108] sm:$0xff]
    %v1632 = vld [vmem:[#allocation10 + $0x110] sm:$0xff]
    %v1633 = vld [vmem:[#allocation10 + $0x118] sm:$0xff]
    %v1634 = vld [vmem:[#allocation10 + $0x120] sm:$0xff]
    %v1635 = vld [vmem:[#allocation10 + $0x128] sm:$0xff]
    %v1636 = vld [vmem:[#allocation10 + $0x130] sm:$0xff]
    %v1637 = vld [vmem:[#allocation10 + $0x138] sm:$0xff]
    %v1638 = vld [vmem:[#allocation10 + $0x140] sm:$0xff]
    %v1639 = vld [vmem:[#allocation10 + $0x148] sm:$0xff]
    %v1640 = vld [vmem:[#allocation10 + $0x150] sm:$0xff]
    %v1641 = vld [vmem:[#allocation10 + $0x158] sm:$0xff]
    %v1642 = vld [vmem:[#allocation10 + $0x160] sm:$0xff]
    %v1643 = vld [vmem:[#allocation10 + $0x168] sm:$0xff]
    %v1644 = vld [vmem:[#allocation10 + $0x170] sm:$0xff]
    %v1645 = vld [vmem:[#allocation10 + $0x178] sm:$0xff]
    %v1646 = vld [vmem:[#allocation10 + $0x180] sm:$0xff]
    %v1647 = vld [vmem:[#allocation10 + $0x188] sm:$0xff]
    %v1648 = vld [vmem:[#allocation10 + $0x190] sm:$0xff]
    %v1649 = vld [vmem:[#allocation10 + $0x198] sm:$0xff]
    %v1650 = vld [vmem:[#allocation10 + $0x1a0] sm:$0xff]
    %v1651 = vld [vmem:[#allocation10 + $0x1a8] sm:$0xff]
    %v1652 = vld [vmem:[#allocation10 + $0x1b0] sm:$0xff]
    %v1653 = vld [vmem:[#allocation10 + $0x1b8] sm:$0xff]
    %v1654 = vld [vmem:[#allocation10 + $0x1c0] sm:$0xff]
    %v1655 = vld [vmem:[#allocation10 + $0x1c8] sm:$0xff]
    %v1656 = vld [vmem:[#allocation10 + $0x1d0] sm:$0xff]
    %v1657 = vld [vmem:[#allocation10 + $0x1d8] sm:$0xff]
    %v1658 = vld [vmem:[#allocation10 + $0x1e0] sm:$0xff]
    %v1659 = vld [vmem:[#allocation10 + $0x1e8] sm:$0xff]
    %v1660 = vld [vmem:[#allocation10 + $0x1f0] sm:$0xff]
    %v1661 = vld [vmem:[#allocation10 + $0x1f8] sm:$0xff]
    %v1662 = vld [vmem:[#allocation10 + $0x200] sm:$0xff]
    %v1663 = vld [vmem:[#allocation10 + $0x208] sm:$0xff]
    %v1664 = vld [vmem:[#allocation10 + $0x210] sm:$0xff]
    %v1665 = vld [vmem:[#allocation10 + $0x218] sm:$0xff]
    %v1666 = vld [vmem:[#allocation10 + $0x220] sm:$0xff]
    %v1667 = vld [vmem:[#allocation10 + $0x228] sm:$0xff]
    %v1668 = vld [vmem:[#allocation10 + $0x230] sm:$0xff]
    %v1669 = vld [vmem:[#allocation10 + $0x238] sm:$0xff]
    %v1670 = vld [vmem:[#allocation10 + $0x240] sm:$0xff]
    %v1671 = vld [vmem:[#allocation10 + $0x248] sm:$0xff]
    %v1672 = vld [vmem:[#allocation10 + $0x250] sm:$0xff]
    %v1673 = vld [vmem:[#allocation10 + $0x258] sm:$0xff]
    %v1674 = vld [vmem:[#allocation10 + $0x260] sm:$0xff]
    %v1675 = vld [vmem:[#allocation10 + $0x268] sm:$0xff]
    %v1676 = vld [vmem:[#allocation10 + $0x270] sm:$0xff]
    %v1677 = vld [vmem:[#allocation10 + $0x278] sm:$0xff]
    %v1678 = vld [vmem:[#allocation10 + $0x280] sm:$0xff]
    %v1679 = vld [vmem:[#allocation10 + $0x288] sm:$0xff]
    %v1680 = vld [vmem:[#allocation10 + $0x290] sm:$0xff]
    %v1681 = vld [vmem:[#allocation10 + $0x298] sm:$0xff]
    %v1682 = vld [vmem:[#allocation10 + $0x2a0] sm:$0xff]
    %v1683 = vld [vmem:[#allocation10 + $0x2a8] sm:$0xff]
    %v1684 = vld [vmem:[#allocation10 + $0x2b0] sm:$0xff]
    %v1685 = vld [vmem:[#allocation10 + $0x2b8] sm:$0xff]
    %v1686 = vld [vmem:[#allocation10 + $0x2c0] sm:$0xff]
    %v1687 = vld [vmem:[#allocation10 + $0x2c8] sm:$0xff]
    %v1688 = vld [vmem:[#allocation10 + $0x2d0] sm:$0xff]
    %v1689 = vld [vmem:[#allocation10 + $0x2d8] sm:$0xff]
    %v1690 = vld [vmem:[#allocation10 + $0x2e0] sm:$0xff]
    %v1691 = vld [vmem:[#allocation10 + $0x2e8] sm:$0xff]
    %v1692 = vld [vmem:[#allocation10 + $0x2f0] sm:$0xff]
    %v1693 = vld [vmem:[#allocation10 + $0x2f8] sm:$0xff]
    %v1694 = vld [vmem:[#allocation10 + $0x300] sm:$0xff]
    %v1695 = vld [vmem:[#allocation10 + $0x308] sm:$0xff]
    %v1696 = vld [vmem:[#allocation10 + $0x310] sm:$0xff]
    %v1697 = vld [vmem:[#allocation10 + $0x318] sm:$0xff]
    %v1698 = vld [vmem:[#allocation10 + $0x320] sm:$0xff]
    %v1699 = vld [vmem:[#allocation10 + $0x328] sm:$0xff]
    %v1700 = vld [vmem:[#allocation10 + $0x330] sm:$0xff]
    %v1701 = vld [vmem:[#allocation10 + $0x338] sm:$0xff]
    %v1702 = vld [vmem:[#allocation10 + $0x340] sm:$0xff]
    %v1703 = vld [vmem:[#allocation10 + $0x348] sm:$0xff]
    %v1704 = vld [vmem:[#allocation10 + $0x350] sm:$0xff]
    %v1705 = vld [vmem:[#allocation10 + $0x358] sm:$0xff]
    %v1706 = vld [vmem:[#allocation10 + $0x360] sm:$0xff]
    %v1707 = vld [vmem:[#allocation10 + $0x368] sm:$0xff]
    %v1708 = vld [vmem:[#allocation10 + $0x370] sm:$0xff]
    %v1709 = vld [vmem:[#allocation10 + $0x378] sm:$0xff]
    %v1710 = vld [vmem:[#allocation10 + $0x380] sm:$0xff]
    %v1711 = vld [vmem:[#allocation10 + $0x388] sm:$0xff]
    %v1712 = vld [vmem:[#allocation10 + $0x390] sm:$0xff]
    %v1713 = vld [vmem:[#allocation10 + $0x398] sm:$0xff]
    %v1714 = vld [vmem:[#allocation10 + $0x3a0] sm:$0xff]
    %v1715 = vld [vmem:[#allocation10 + $0x3a8] sm:$0xff]
    %v1716 = vld [vmem:[#allocation10 + $0x3b0] sm:$0xff]
    %v1717 = vld [vmem:[#allocation10 + $0x3b8] sm:$0xff]
    %v1718 = vld [vmem:[#allocation10 + $0x3c0] sm:$0xff]
    %v1719 = vld [vmem:[#allocation10 + $0x3c8] sm:$0xff]
    %v1720 = vld [vmem:[#allocation10 + $0x3d0] sm:$0xff]
    %v1721 = vld [vmem:[#allocation10 + $0x3d8] sm:$0xff]
    %v1722 = vld [vmem:[#allocation10 + $0x3e0] sm:$0xff]
    %v1723 = vld [vmem:[#allocation10 + $0x3e8] sm:$0xff]
    %v1724 = vld [vmem:[#allocation10 + $0x3f0] sm:$0xff]
    %v1725 = vld [vmem:[#allocation10 + $0x3f8] sm:$0xff]
    %v1726 = vpack.c.bf16 %v930, %v930
    %v1727 = vpack.c.bf16 %v932, %v932
    %v1729 = vlaneseq
    %v1730 = vshrl.u32 %v1729, 7
    %v1731 = vsub.s32 0, %v1730
    %v1732 = vrot.slane %v1565, %v1731
    %v1733 = vlaneseq
    %v1734 = vshrl.u32 %v1733, 7
    %v1735 = vsub.s32 1, %v1734
    %v1736 = vrot.slane %v1565, %v1735
    %v1771 = vunpack.c.l.b16 %v1566
    %v1772 = vunpack.c.h.b16 %v1566
    %v1773 = vunpack.c.l.b16 %v1567
    %v1774 = vunpack.c.h.b16 %v1567
    %v1775 = vunpack.c.l.b16 %v1568
    %v1776 = vunpack.c.h.b16 %v1568
    %v1777 = vunpack.c.l.b16 %v1569
    %v1778 = vunpack.c.h.b16 %v1569
    %v1779 = vunpack.c.l.b16 %v1570
    %v1780 = vunpack.c.h.b16 %v1570
    %v1781 = vunpack.c.l.b16 %v1571
    %v1782 = vunpack.c.h.b16 %v1571
    %v1783 = vunpack.c.l.b16 %v1572
    %v1784 = vunpack.c.h.b16 %v1572
    %v1785 = vunpack.c.l.b16 %v1573
    %v1786 = vunpack.c.h.b16 %v1573
    %v1787 = vunpack.c.l.b16 %v1574
    %v1788 = vunpack.c.h.b16 %v1574
    %v1789 = vunpack.c.l.b16 %v1575
    %v1790 = vunpack.c.h.b16 %v1575
    %v1791 = vunpack.c.l.b16 %v1576
    %v1792 = vunpack.c.h.b16 %v1576
    %v1793 = vunpack.c.l.b16 %v1577
    %v1794 = vunpack.c.h.b16 %v1577
    %v1795 = vunpack.c.l.b16 %v1578
    %v1796 = vunpack.c.h.b16 %v1578
    %v1797 = vunpack.c.l.b16 %v1579
    %v1798 = vunpack.c.h.b16 %v1579
    %v1799 = vunpack.c.l.b16 %v1580
    %v1800 = vunpack.c.h.b16 %v1580
    %v1801 = vunpack.c.l.b16 %v1581
    %v1802 = vunpack.c.h.b16 %v1581
    %v1803 = vunpack.c.l.b16 %v1582
    %v1804 = vunpack.c.h.b16 %v1582
    %v1805 = vunpack.c.l.b16 %v1583
    %v1806 = vunpack.c.h.b16 %v1583
    %v1807 = vunpack.c.l.b16 %v1584
    %v1808 = vunpack.c.h.b16 %v1584
    %v1809 = vunpack.c.l.b16 %v1585
    %v1810 = vunpack.c.h.b16 %v1585
    %v1811 = vunpack.c.l.b16 %v1586
    %v1812 = vunpack.c.h.b16 %v1586
    %v1813 = vunpack.c.l.b16 %v1587
    %v1814 = vunpack.c.h.b16 %v1587
    %v1815 = vunpack.c.l.b16 %v1588
    %v1816 = vunpack.c.h.b16 %v1588
    %v1817 = vunpack.c.l.b16 %v1589
    %v1818 = vunpack.c.h.b16 %v1589
    %v1819 = vunpack.c.l.b16 %v1590
    %v1820 = vunpack.c.h.b16 %v1590
    %v1821 = vunpack.c.l.b16 %v1591
    %v1822 = vunpack.c.h.b16 %v1591
    %v1823 = vunpack.c.l.b16 %v1592
    %v1824 = vunpack.c.h.b16 %v1592
    %v1825 = vunpack.c.l.b16 %v1593
    %v1826 = vunpack.c.h.b16 %v1593
    %v1827 = vunpack.c.l.b16 %v1594
    %v1828 = vunpack.c.h.b16 %v1594
    %v1829 = vunpack.c.l.b16 %v1595
    %v1830 = vunpack.c.h.b16 %v1595
    %v1831 = vunpack.c.l.b16 %v1596
    %v1832 = vunpack.c.h.b16 %v1596
    %v1833 = vunpack.c.l.b16 %v1597
    %v1834 = vunpack.c.h.b16 %v1597
    %v1835 = vpack.c.b16 %v1773, %v1771
    %v1836 = vpack.c.b16 %v1774, %v1772
    %v1837 = vpack.c.b16 %v1777, %v1775
    %v1838 = vpack.c.b16 %v1778, %v1776
    %v1839 = vpack.c.b16 %v1781, %v1779
    %v1840 = vpack.c.b16 %v1782, %v1780
    %v1841 = vpack.c.b16 %v1785, %v1783
    %v1842 = vpack.c.b16 %v1786, %v1784
    %v1843 = vpack.c.b16 %v1789, %v1787
    %v1844 = vpack.c.b16 %v1790, %v1788
    %v1845 = vpack.c.b16 %v1793, %v1791
    %v1846 = vpack.c.b16 %v1794, %v1792
    %v1847 = vpack.c.b16 %v1797, %v1795
    %v1848 = vpack.c.b16 %v1798, %v1796
    %v1849 = vpack.c.b16 %v1801, %v1799
    %v1850 = vpack.c.b16 %v1802, %v1800
    %v1851 = vpack.c.b16 %v1805, %v1803
    %v1852 = vpack.c.b16 %v1806, %v1804
    %v1853 = vpack.c.b16 %v1809, %v1807
    %v1854 = vpack.c.b16 %v1810, %v1808
    %v1855 = vpack.c.b16 %v1813, %v1811
    %v1856 = vpack.c.b16 %v1814, %v1812
    %v1857 = vpack.c.b16 %v1817, %v1815
    %v1858 = vpack.c.b16 %v1818, %v1816
    %v1859 = vpack.c.b16 %v1821, %v1819
    %v1860 = vpack.c.b16 %v1822, %v1820
    %v1861 = vpack.c.b16 %v1825, %v1823
    %v1862 = vpack.c.b16 %v1826, %v1824
    %v1863 = vpack.c.b16 %v1829, %v1827
    %v1864 = vpack.c.b16 %v1830, %v1828
    %v1865 = vpack.c.b16 %v1833, %v1831
    %v1866 = vpack.c.b16 %v1834, %v1832
    %1899 = vmatprep.subr.bf16.mxu0 %v1850
    %1900 = vmatpush1.bf16.msra.mxu0 %v1849
    %1901 = vmatprep.subr.bf16.mxu0 %v1848
    %1902 = vmatpush1.bf16.msra.mxu0 %v1847
    %1903 = vmatprep.subr.bf16.mxu0 %v1846
    %1904 = vmatpush1.bf16.msra.mxu0 %v1845
    %1905 = vmatprep.subr.bf16.mxu0 %v1844
    %1906 = vmatpush1.bf16.msra.mxu0 %v1843
    %1907 = vmatprep.subr.bf16.mxu0 %v1842
    %1908 = vmatpush1.bf16.msra.mxu0 %v1841
    %1909 = vmatprep.subr.bf16.mxu0 %v1840
    %1910 = vmatpush1.bf16.msra.mxu0 %v1839
    %1911 = vmatprep.subr.bf16.mxu0 %v1838
    %1912 = vmatpush1.bf16.msra.mxu0 %v1837
    %1913 = vmatprep.subr.bf16.mxu0 %v1836
    %1914 = vmatpush1.bf16.msra.mxu0 %v1835
    %1915 = vmatprep.subr.bf16.mxu0 %v1866
    %1916 = vmatpush2.bf16.msra.mxu0 %v1865
    %1917 = vmatprep.subr.bf16.mxu0 %v1864
    %1918 = vmatpush2.bf16.msra.mxu0 %v1863
    %1919 = vmatprep.subr.bf16.mxu0 %v1862
    %1920 = vmatpush2.bf16.msra.mxu0 %v1861
    %1921 = vmatprep.subr.bf16.mxu0 %v1860
    %1922 = vmatpush2.bf16.msra.mxu0 %v1859
    %1923 = vmatprep.subr.bf16.mxu0 %v1858
    %1924 = vmatpush2.bf16.msra.mxu0 %v1857
    %1925 = vmatprep.subr.bf16.mxu0 %v1856
    %1926 = vmatpush2.bf16.msra.mxu0 %v1855
    %1927 = vmatprep.subr.bf16.mxu0 %v1854
    %1928 = vmatpush2.bf16.msra.mxu0 %v1853
    %1929 = vmatprep.subr.bf16.mxu0 %v1852
    %1930 = vmatpush2.bf16.msra.mxu0 %v1851
    %1931 = vmatprep.mubr.bf16.mxu0 %v1727
    %1932 = vmatmul.mubr.bf16.gmra.mxu0 %v1726
    %v1933 = vpop.f32.mrf.mxu0
    %v1934 = vadd.f32 %v1732, %v1933
    %v1935 = vpop.f32.mrf.mxu0
    %v1936 = vadd.f32 %v1736, %v1935
    %v1937 = vpop.f32.mrf.mxu0
    %v1938 = vpop.f32.mrf.mxu0
    %1939 = vdwg.mxu0
    %v1940 = vmul.f32 %v1934, %v1548
    %v1941 = vmul.f32 %v1936, %v1549
    %v1942 = vmax.f32 %v1940, %v1941
    %1943 = vmax.xlane.f32.xlu0 %v1942
    %v1944 = vpop.xlane.xlu0 %1943
    %v1945 = vsub.f32 %v1940, %v1944
    %v1946 = vsub.f32 %v1941, %v1944
    %v1947 = vmul.f32 %v1945, 1.442695
    %v1948 = vpow.pop %v1947
    %v1949 = vmul.f32 %v1946, 1.442695
    %v1950 = vpow.pop %v1949
    %v1951 = vadd.f32 %v1948, %v1950
    %1952 = vadd.xlane.f32.xlu0 %v1951
    %v1953 = vpop.xlane.xlu0 %1952
    %v1954 = vrcp.pop %v1953
    %v1955 = vmul.f32 %v1948, %v1954
    %v1956 = vmul.f32 %v1950, %v1954
    %v1957 = vmul.f32 %v1955, %v1563
    %v1958 = vmul.f32 %v1956, %v1564
    %v1959 = vpack.c.bf16 %v1957, %v1957
    %v1960 = vpack.c.bf16 %v1958, %v1958
    %v1961 = vpack.c.bf16 %v971, %v971
    %v1962 = vpack.c.bf16 %v973, %v973
    %1963 = vmatprep.subr.bf16.mxu0 %v1850
    %1964 = vmatpush1.bf16.msra.mxu0 %v1849
    %1965 = vmatprep.subr.bf16.mxu0 %v1848
    %1966 = vmatpush1.bf16.msra.mxu0 %v1847
    %1967 = vmatprep.subr.bf16.mxu0 %v1846
    %1968 = vmatpush1.bf16.msra.mxu0 %v1845
    %1969 = vmatprep.subr.bf16.mxu0 %v1844
    %1970 = vmatpush1.bf16.msra.mxu0 %v1843
    %1971 = vmatprep.subr.bf16.mxu0 %v1842
    %1972 = vmatpush1.bf16.msra.mxu0 %v1841
    %1973 = vmatprep.subr.bf16.mxu0 %v1840
    %1974 = vmatpush1.bf16.msra.mxu0 %v1839
    %1975 = vmatprep.subr.bf16.mxu0 %v1838
    %1976 = vmatpush1.bf16.msra.mxu0 %v1837
    %1977 = vmatprep.subr.bf16.mxu0 %v1836
    %1978 = vmatpush1.bf16.msra.mxu0 %v1835
    %1979 = vmatprep.subr.bf16.mxu0 %v1866
    %1980 = vmatpush2.bf16.msra.mxu0 %v1865
    %1981 = vmatprep.subr.bf16.mxu0 %v1864
    %1982 = vmatpush2.bf16.msra.mxu0 %v1863
    %1983 = vmatprep.subr.bf16.mxu0 %v1862
    %1984 = vmatpush2.bf16.msra.mxu0 %v1861
    %1985 = vmatprep.subr.bf16.mxu0 %v1860
    %1986 = vmatpush2.bf16.msra.mxu0 %v1859
    %1987 = vmatprep.subr.bf16.mxu0 %v1858
    %1988 = vmatpush2.bf16.msra.mxu0 %v1857
    %1989 = vmatprep.subr.bf16.mxu0 %v1856
    %1990 = vmatpush2.bf16.msra.mxu0 %v1855
    %1991 = vmatprep.subr.bf16.mxu0 %v1854
    %1992 = vmatpush2.bf16.msra.mxu0 %v1853
    %1993 = vmatprep.subr.bf16.mxu0 %v1852
    %1994 = vmatpush2.bf16.msra.mxu0 %v1851
    %1995 = vmatprep.mubr.bf16.mxu0 %v1962
    %1996 = vmatmul.mubr.bf16.gmra.mxu0 %v1961
    %v1997 = vpop.f32.mrf.mxu0
    %v1998 = vadd.f32 %v1732, %v1997
    %v1999 = vpop.f32.mrf.mxu0
    %v2000 = vadd.f32 %v1736, %v1999
    %v2001 = vpop.f32.mrf.mxu0
    %v2002 = vpop.f32.mrf.mxu0
    %2003 = vdwg.mxu0
    %v2004 = vmul.f32 %v1998, %v1548
    %v2005 = vmul.f32 %v2000, %v1549
    %v2006 = vmax.f32 %v2004, %v2005
    %2007 = vmax.xlane.f32.xlu0 %v2006
    %v2008 = vpop.xlane.xlu0 %2007
    %v2009 = vsub.f32 %v2004, %v2008
    %v2010 = vsub.f32 %v2005, %v2008
    %v2011 = vmul.f32 %v2009, 1.442695
    %v2012 = vpow.pop %v2011
    %v2013 = vmul.f32 %v2010, 1.442695
    %v2014 = vpow.pop %v2013
    %v2015 = vadd.f32 %v2012, %v2014
    %2016 = vadd.xlane.f32.xlu0 %v2015
    %v2017 = vpop.xlane.xlu0 %2016
    %v2018 = vrcp.pop %v2017
    %v2019 = vmul.f32 %v2012, %v2018
    %v2020 = vmul.f32 %v2014, %v2018
    %v2021 = vmul.f32 %v2019, %v1563
    %v2022 = vmul.f32 %v2020, %v1564
    %v2023 = vpack.c.bf16 %v2021, %v2021
    %v2024 = vpack.c.bf16 %v2022, %v2022
    %v2057 = vunpack.c.l.b16 %v1630
    %v2058 = vunpack.c.h.b16 %v1630
    %v2059 = vunpack.c.l.b16 %v1631
    %v2060 = vunpack.c.h.b16 %v1631
    %v2061 = vunpack.c.l.b16 %v1632
    %v2062 = vunpack.c.h.b16 %v1632
    %v2063 = vunpack.c.l.b16 %v1633
    %v2064 = vunpack.c.h.b16 %v1633
    %v2065 = vunpack.c.l.b16 %v1634
    %v2066 = vunpack.c.h.b16 %v1634
    %v2067 = vunpack.c.l.b16 %v1635
    %v2068 = vunpack.c.h.b16 %v1635
    %v2069 = vunpack.c.l.b16 %v1636
    %v2070 = vunpack.c.h.b16 %v1636
    %v2071 = vunpack.c.l.b16 %v1637
    %v2072 = vunpack.c.h.b16 %v1637
    %v2073 = vunpack.c.l.b16 %v1638
    %v2074 = vunpack.c.h.b16 %v1638
    %v2075 = vunpack.c.l.b16 %v1639
    %v2076 = vunpack.c.h.b16 %v1639
    %v2077 = vunpack.c.l.b16 %v1640
    %v2078 = vunpack.c.h.b16 %v1640
    %v2079 = vunpack.c.l.b16 %v1641
    %v2080 = vunpack.c.h.b16 %v1641
    %v2081 = vunpack.c.l.b16 %v1642
    %v2082 = vunpack.c.h.b16 %v1642
    %v2083 = vunpack.c.l.b16 %v1643
    %v2084 = vunpack.c.h.b16 %v1643
    %v2085 = vunpack.c.l.b16 %v1644
    %v2086 = vunpack.c.h.b16 %v1644
    %v2087 = vunpack.c.l.b16 %v1645
    %v2088 = vunpack.c.h.b16 %v1645
    %v2089 = vunpack.c.l.b16 %v1646
    %v2090 = vunpack.c.h.b16 %v1646
    %v2091 = vunpack.c.l.b16 %v1647
    %v2092 = vunpack.c.h.b16 %v1647
    %v2093 = vunpack.c.l.b16 %v1648
    %v2094 = vunpack.c.h.b16 %v1648
    %v2095 = vunpack.c.l.b16 %v1649
    %v2096 = vunpack.c.h.b16 %v1649
    %v2097 = vunpack.c.l.b16 %v1650
    %v2098 = vunpack.c.h.b16 %v1650
    %v2099 = vunpack.c.l.b16 %v1651
    %v2100 = vunpack.c.h.b16 %v1651
    %v2101 = vunpack.c.l.b16 %v1652
    %v2102 = vunpack.c.h.b16 %v1652
    %v2103 = vunpack.c.l.b16 %v1653
    %v2104 = vunpack.c.h.b16 %v1653
    %v2105 = vunpack.c.l.b16 %v1654
    %v2106 = vunpack.c.h.b16 %v1654
    %v2107 = vunpack.c.l.b16 %v1655
    %v2108 = vunpack.c.h.b16 %v1655
    %v2109 = vunpack.c.l.b16 %v1656
    %v2110 = vunpack.c.h.b16 %v1656
    %v2111 = vunpack.c.l.b16 %v1657
    %v2112 = vunpack.c.h.b16 %v1657
    %v2113 = vunpack.c.l.b16 %v1658
    %v2114 = vunpack.c.h.b16 %v1658
    %v2115 = vunpack.c.l.b16 %v1659
    %v2116 = vunpack.c.h.b16 %v1659
    %v2117 = vunpack.c.l.b16 %v1660
    %v2118 = vunpack.c.h.b16 %v1660
    %v2119 = vunpack.c.l.b16 %v1661
    %v2120 = vunpack.c.h.b16 %v1661
    %v2121 = vpack.c.b16 %v2059, %v2057
    %v2122 = vpack.c.b16 %v2060, %v2058
    %v2123 = vpack.c.b16 %v2063, %v2061
    %v2124 = vpack.c.b16 %v2064, %v2062
    %v2125 = vpack.c.b16 %v2067, %v2065
    %v2126 = vpack.c.b16 %v2068, %v2066
    %v2127 = vpack.c.b16 %v2071, %v2069
    %v2128 = vpack.c.b16 %v2072, %v2070
    %v2129 = vpack.c.b16 %v2075, %v2073
    %v2130 = vpack.c.b16 %v2076, %v2074
    %v2131 = vpack.c.b16 %v2079, %v2077
    %v2132 = vpack.c.b16 %v2080, %v2078
    %v2133 = vpack.c.b16 %v2083, %v2081
    %v2134 = vpack.c.b16 %v2084, %v2082
    %v2135 = vpack.c.b16 %v2087, %v2085
    %v2136 = vpack.c.b16 %v2088, %v2086
    %v2137 = vpack.c.b16 %v2091, %v2089
    %v2138 = vpack.c.b16 %v2092, %v2090
    %v2139 = vpack.c.b16 %v2095, %v2093
    %v2140 = vpack.c.b16 %v2096, %v2094
    %v2141 = vpack.c.b16 %v2099, %v2097
    %v2142 = vpack.c.b16 %v2100, %v2098
    %v2143 = vpack.c.b16 %v2103, %v2101
    %v2144 = vpack.c.b16 %v2104, %v2102
    %v2145 = vpack.c.b16 %v2107, %v2105
    %v2146 = vpack.c.b16 %v2108, %v2106
    %v2147 = vpack.c.b16 %v2111, %v2109
    %v2148 = vpack.c.b16 %v2112, %v2110
    %v2149 = vpack.c.b16 %v2115, %v2113
    %v2150 = vpack.c.b16 %v2116, %v2114
    %v2151 = vpack.c.b16 %v2119, %v2117
    %v2152 = vpack.c.b16 %v2120, %v2118
    %2185 = vmatprep.subr.bf16.mxu0 %v2136
    %2186 = vmatpush1.bf16.msra.mxu0 %v2135
    %2187 = vmatprep.subr.bf16.mxu0 %v2134
    %2188 = vmatpush1.bf16.msra.mxu0 %v2133
    %2189 = vmatprep.subr.bf16.mxu0 %v2132
    %2190 = vmatpush1.bf16.msra.mxu0 %v2131
    %2191 = vmatprep.subr.bf16.mxu0 %v2130
    %2192 = vmatpush1.bf16.msra.mxu0 %v2129
    %2193 = vmatprep.subr.bf16.mxu0 %v2128
    %2194 = vmatpush1.bf16.msra.mxu0 %v2127
    %2195 = vmatprep.subr.bf16.mxu0 %v2126
    %2196 = vmatpush1.bf16.msra.mxu0 %v2125
    %2197 = vmatprep.subr.bf16.mxu0 %v2124
    %2198 = vmatpush1.bf16.msra.mxu0 %v2123
    %2199 = vmatprep.subr.bf16.mxu0 %v2122
    %2200 = vmatpush1.bf16.msra.mxu0 %v2121
    %2201 = vmatprep.subr.bf16.mxu0 %v2152
    %2202 = vmatpush2.bf16.msra.mxu0 %v2151
    %2203 = vmatprep.subr.bf16.mxu0 %v2150
    %2204 = vmatpush2.bf16.msra.mxu0 %v2149
    %2205 = vmatprep.subr.bf16.mxu0 %v2148
    %2206 = vmatpush2.bf16.msra.mxu0 %v2147
    %2207 = vmatprep.subr.bf16.mxu0 %v2146
    %2208 = vmatpush2.bf16.msra.mxu0 %v2145
    %2209 = vmatprep.subr.bf16.mxu0 %v2144
    %2210 = vmatpush2.bf16.msra.mxu0 %v2143
    %2211 = vmatprep.subr.bf16.mxu0 %v2142
    %2212 = vmatpush2.bf16.msra.mxu0 %v2141
    %2213 = vmatprep.subr.bf16.mxu0 %v2140
    %2214 = vmatpush2.bf16.msra.mxu0 %v2139
    %2215 = vmatprep.subr.bf16.mxu0 %v2138
    %2216 = vmatpush2.bf16.msra.mxu0 %v2137
    %2217 = vmatprep.mubr.bf16.mxu0 %v2024
    %2218 = vmatmul.mubr.bf16.gmra.mxu0 %v2023
    %v2219 = vpop.f32.mrf.mxu0
    %v2220 = vadd.f32 0.0, %v2219
    %v2221 = vpop.f32.mrf.mxu0
    %v2222 = vadd.f32 0.0, %v2221
    %v2223 = vpop.f32.mrf.mxu0
    %v2224 = vpop.f32.mrf.mxu0
    %2225 = vdwg.mxu0
    %v2258 = vunpack.c.l.b16 %v1598
    %v2259 = vunpack.c.h.b16 %v1598
    %v2260 = vunpack.c.l.b16 %v1599
    %v2261 = vunpack.c.h.b16 %v1599
    %v2262 = vunpack.c.l.b16 %v1600
    %v2263 = vunpack.c.h.b16 %v1600
    %v2264 = vunpack.c.l.b16 %v1601
    %v2265 = vunpack.c.h.b16 %v1601
    %v2266 = vunpack.c.l.b16 %v1602
    %v2267 = vunpack.c.h.b16 %v1602
    %v2268 = vunpack.c.l.b16 %v1603
    %v2269 = vunpack.c.h.b16 %v1603
    %v2270 = vunpack.c.l.b16 %v1604
    %v2271 = vunpack.c.h.b16 %v1604
    %v2272 = vunpack.c.l.b16 %v1605
    %v2273 = vunpack.c.h.b16 %v1605
    %v2274 = vunpack.c.l.b16 %v1606
    %v2275 = vunpack.c.h.b16 %v1606
    %v2276 = vunpack.c.l.b16 %v1607
    %v2277 = vunpack.c.h.b16 %v1607
    %v2278 = vunpack.c.l.b16 %v1608
    %v2279 = vunpack.c.h.b16 %v1608
    %v2280 = vunpack.c.l.b16 %v1609
    %v2281 = vunpack.c.h.b16 %v1609
    %v2282 = vunpack.c.l.b16 %v1610
    %v2283 = vunpack.c.h.b16 %v1610
    %v2284 = vunpack.c.l.b16 %v1611
    %v2285 = vunpack.c.h.b16 %v1611
    %v2286 = vunpack.c.l.b16 %v1612
    %v2287 = vunpack.c.h.b16 %v1612
    %v2288 = vunpack.c.l.b16 %v1613
    %v2289 = vunpack.c.h.b16 %v1613
    %v2290 = vunpack.c.l.b16 %v1614
    %v2291 = vunpack.c.h.b16 %v1614
    %v2292 = vunpack.c.l.b16 %v1615
    %v2293 = vunpack.c.h.b16 %v1615
    %v2294 = vunpack.c.l.b16 %v1616
    %v2295 = vunpack.c.h.b16 %v1616
    %v2296 = vunpack.c.l.b16 %v1617
    %v2297 = vunpack.c.h.b16 %v1617
    %v2298 = vunpack.c.l.b16 %v1618
    %v2299 = vunpack.c.h.b16 %v1618
    %v2300 = vunpack.c.l.b16 %v1619
    %v2301 = vunpack.c.h.b16 %v1619
    %v2302 = vunpack.c.l.b16 %v1620
    %v2303 = vunpack.c.h.b16 %v1620
    %v2304 = vunpack.c.l.b16 %v1621
    %v2305 = vunpack.c.h.b16 %v1621
    %v2306 = vunpack.c.l.b16 %v1622
    %v2307 = vunpack.c.h.b16 %v1622
    %v2308 = vunpack.c.l.b16 %v1623
    %v2309 = vunpack.c.h.b16 %v1623
    %v2310 = vunpack.c.l.b16 %v1624
    %v2311 = vunpack.c.h.b16 %v1624
    %v2312 = vunpack.c.l.b16 %v1625
    %v2313 = vunpack.c.h.b16 %v1625
    %v2314 = vunpack.c.l.b16 %v1626
    %v2315 = vunpack.c.h.b16 %v1626
    %v2316 = vunpack.c.l.b16 %v1627
    %v2317 = vunpack.c.h.b16 %v1627
    %v2318 = vunpack.c.l.b16 %v1628
    %v2319 = vunpack.c.h.b16 %v1628
    %v2320 = vunpack.c.l.b16 %v1629
    %v2321 = vunpack.c.h.b16 %v1629
    %v2322 = vpack.c.b16 %v2260, %v2258
    %v2323 = vpack.c.b16 %v2261, %v2259
    %v2324 = vpack.c.b16 %v2264, %v2262
    %v2325 = vpack.c.b16 %v2265, %v2263
    %v2326 = vpack.c.b16 %v2268, %v2266
    %v2327 = vpack.c.b16 %v2269, %v2267
    %v2328 = vpack.c.b16 %v2272, %v2270
    %v2329 = vpack.c.b16 %v2273, %v2271
    %v2330 = vpack.c.b16 %v2276, %v2274
    %v2331 = vpack.c.b16 %v2277, %v2275
    %v2332 = vpack.c.b16 %v2280, %v2278
    %v2333 = vpack.c.b16 %v2281, %v2279
    %v2334 = vpack.c.b16 %v2284, %v2282
    %v2335 = vpack.c.b16 %v2285, %v2283
    %v2336 = vpack.c.b16 %v2288, %v2286
    %v2337 = vpack.c.b16 %v2289, %v2287
    %v2338 = vpack.c.b16 %v2292, %v2290
    %v2339 = vpack.c.b16 %v2293, %v2291
    %v2340 = vpack.c.b16 %v2296, %v2294
    %v2341 = vpack.c.b16 %v2297, %v2295
    %v2342 = vpack.c.b16 %v2300, %v2298
    %v2343 = vpack.c.b16 %v2301, %v2299
    %v2344 = vpack.c.b16 %v2304, %v2302
    %v2345 = vpack.c.b16 %v2305, %v2303
    %v2346 = vpack.c.b16 %v2308, %v2306
    %v2347 = vpack.c.b16 %v2309, %v2307
    %v2348 = vpack.c.b16 %v2312, %v2310
    %v2349 = vpack.c.b16 %v2313, %v2311
    %v2350 = vpack.c.b16 %v2316, %v2314
    %v2351 = vpack.c.b16 %v2317, %v2315
    %v2352 = vpack.c.b16 %v2320, %v2318
    %v2353 = vpack.c.b16 %v2321, %v2319
    %2386 = vmatprep.subr.bf16.mxu0 %v2337
    %2387 = vmatpush1.bf16.msra.mxu0 %v2336
    %2388 = vmatprep.subr.bf16.mxu0 %v2335
    %2389 = vmatpush1.bf16.msra.mxu0 %v2334
    %2390 = vmatprep.subr.bf16.mxu0 %v2333
    %2391 = vmatpush1.bf16.msra.mxu0 %v2332
    %2392 = vmatprep.subr.bf16.mxu0 %v2331
    %2393 = vmatpush1.bf16.msra.mxu0 %v2330
    %2394 = vmatprep.subr.bf16.mxu0 %v2329
    %2395 = vmatpush1.bf16.msra.mxu0 %v2328
    %2396 = vmatprep.subr.bf16.mxu0 %v2327
    %2397 = vmatpush1.bf16.msra.mxu0 %v2326
    %2398 = vmatprep.subr.bf16.mxu0 %v2325
    %2399 = vmatpush1.bf16.msra.mxu0 %v2324
    %2400 = vmatprep.subr.bf16.mxu0 %v2323
    %2401 = vmatpush1.bf16.msra.mxu0 %v2322
    %2402 = vmatprep.subr.bf16.mxu0 %v2353
    %2403 = vmatpush2.bf16.msra.mxu0 %v2352
    %2404 = vmatprep.subr.bf16.mxu0 %v2351
    %2405 = vmatpush2.bf16.msra.mxu0 %v2350
    %2406 = vmatprep.subr.bf16.mxu0 %v2349
    %2407 = vmatpush2.bf16.msra.mxu0 %v2348
    %2408 = vmatprep.subr.bf16.mxu0 %v2347
    %2409 = vmatpush2.bf16.msra.mxu0 %v2346
    %2410 = vmatprep.subr.bf16.mxu0 %v2345
    %2411 = vmatpush2.bf16.msra.mxu0 %v2344
    %2412 = vmatprep.subr.bf16.mxu0 %v2343
    %2413 = vmatpush2.bf16.msra.mxu0 %v2342
    %2414 = vmatprep.subr.bf16.mxu0 %v2341
    %2415 = vmatpush2.bf16.msra.mxu0 %v2340
    %2416 = vmatprep.subr.bf16.mxu0 %v2339
    %2417 = vmatpush2.bf16.msra.mxu0 %v2338
    %2418 = vmatprep.mubr.bf16.mxu0 %v1960
    %2419 = vmatmul.mubr.bf16.gmra.mxu0 %v1959
    %v2420 = vpop.f32.mrf.mxu0
    %v2421 = vadd.f32 %v2220, %v2420
    %v2422 = vpop.f32.mrf.mxu0
    %v2423 = vadd.f32 %v2222, %v2422
    %v2424 = vpop.f32.mrf.mxu0
    %v2425 = vpop.f32.mrf.mxu0
    %2426 = vdwg.mxu0
    %v2427 = vpack.c.bf16 %v1012, %v1012
    %v2428 = vpack.c.bf16 %v1014, %v1014
    %2429 = vmatprep.subr.bf16.mxu0 %v1850
    %2430 = vmatpush1.bf16.msra.mxu0 %v1849
    %2431 = vmatprep.subr.bf16.mxu0 %v1848
    %2432 = vmatpush1.bf16.msra.mxu0 %v1847
    %2433 = vmatprep.subr.bf16.mxu0 %v1846
    %2434 = vmatpush1.bf16.msra.mxu0 %v1845
    %2435 = vmatprep.subr.bf16.mxu0 %v1844
    %2436 = vmatpush1.bf16.msra.mxu0 %v1843
    %2437 = vmatprep.subr.bf16.mxu0 %v1842
    %2438 = vmatpush1.bf16.msra.mxu0 %v1841
    %2439 = vmatprep.subr.bf16.mxu0 %v1840
    %2440 = vmatpush1.bf16.msra.mxu0 %v1839
    %2441 = vmatprep.subr.bf16.mxu0 %v1838
    %2442 = vmatpush1.bf16.msra.mxu0 %v1837
    %2443 = vmatprep.subr.bf16.mxu0 %v1836
    %2444 = vmatpush1.bf16.msra.mxu0 %v1835
    %2445 = vmatprep.subr.bf16.mxu0 %v1866
    %2446 = vmatpush2.bf16.msra.mxu0 %v1865
    %2447 = vmatprep.subr.bf16.mxu0 %v1864
    %2448 = vmatpush2.bf16.msra.mxu0 %v1863
    %2449 = vmatprep.subr.bf16.mxu0 %v1862
    %2450 = vmatpush2.bf16.msra.mxu0 %v1861
    %2451 = vmatprep.subr.bf16.mxu0 %v1860
    %2452 = vmatpush2.bf16.msra.mxu0 %v1859
    %2453 = vmatprep.subr.bf16.mxu0 %v1858
    %2454 = vmatpush2.bf16.msra.mxu0 %v1857
    %2455 = vmatprep.subr.bf16.mxu0 %v1856
    %2456 = vmatpush2.bf16.msra.mxu0 %v1855
    %2457 = vmatprep.subr.bf16.mxu0 %v1854
    %2458 = vmatpush2.bf16.msra.mxu0 %v1853
    %2459 = vmatprep.subr.bf16.mxu0 %v1852
    %2460 = vmatpush2.bf16.msra.mxu0 %v1851
    %2461 = vmatprep.mubr.bf16.mxu0 %v2428
    %2462 = vmatmul.mubr.bf16.gmra.mxu0 %v2427
    %v2463 = vpop.f32.mrf.mxu0
    %v2464 = vadd.f32 %v1732, %v2463
    %v2465 = vpop.f32.mrf.mxu0
    %v2466 = vadd.f32 %v1736, %v2465
    %v2467 = vpop.f32.mrf.mxu0
    %v2468 = vpop.f32.mrf.mxu0
    %2469 = vdwg.mxu0
    %v2470 = vmul.f32 %v2464, %v1548
    %v2471 = vmul.f32 %v2466, %v1549
    %v2472 = vmax.f32 %v2470, %v2471
    %2473 = vmax.xlane.f32.xlu0 %v2472
    %v2474 = vpop.xlane.xlu0 %2473
    %v2475 = vsub.f32 %v2470, %v2474
    %v2476 = vsub.f32 %v2471, %v2474
    %v2477 = vmul.f32 %v2475, 1.442695
    %v2478 = vpow.pop %v2477
    %v2479 = vmul.f32 %v2476, 1.442695
    %v2480 = vpow.pop %v2479
    %v2481 = vadd.f32 %v2478, %v2480
    %2482 = vadd.xlane.f32.xlu0 %v2481
    %v2483 = vpop.xlane.xlu0 %2482
    %v2484 = vrcp.pop %v2483
    %v2485 = vmul.f32 %v2478, %v2484
    %v2486 = vmul.f32 %v2480, %v2484
    %v2487 = vmul.f32 %v2485, %v1563
    %v2488 = vmul.f32 %v2486, %v1564
    %v2489 = vpack.c.bf16 %v2487, %v2487
    %v2490 = vpack.c.bf16 %v2488, %v2488
    %v2523 = vunpack.c.l.b16 %v1662
    %v2524 = vunpack.c.h.b16 %v1662
    %v2525 = vunpack.c.l.b16 %v1663
    %v2526 = vunpack.c.h.b16 %v1663
    %v2527 = vunpack.c.l.b16 %v1664
    %v2528 = vunpack.c.h.b16 %v1664
    %v2529 = vunpack.c.l.b16 %v1665
    %v2530 = vunpack.c.h.b16 %v1665
    %v2531 = vunpack.c.l.b16 %v1666
    %v2532 = vunpack.c.h.b16 %v1666
    %v2533 = vunpack.c.l.b16 %v1667
    %v2534 = vunpack.c.h.b16 %v1667
    %v2535 = vunpack.c.l.b16 %v1668
    %v2536 = vunpack.c.h.b16 %v1668
    %v2537 = vunpack.c.l.b16 %v1669
    %v2538 = vunpack.c.h.b16 %v1669
    %v2539 = vunpack.c.l.b16 %v1670
    %v2540 = vunpack.c.h.b16 %v1670
    %v2541 = vunpack.c.l.b16 %v1671
    %v2542 = vunpack.c.h.b16 %v1671
    %v2543 = vunpack.c.l.b16 %v1672
    %v2544 = vunpack.c.h.b16 %v1672
    %v2545 = vunpack.c.l.b16 %v1673
    %v2546 = vunpack.c.h.b16 %v1673
    %v2547 = vunpack.c.l.b16 %v1674
    %v2548 = vunpack.c.h.b16 %v1674
    %v2549 = vunpack.c.l.b16 %v1675
    %v2550 = vunpack.c.h.b16 %v1675
    %v2551 = vunpack.c.l.b16 %v1676
    %v2552 = vunpack.c.h.b16 %v1676
    %v2553 = vunpack.c.l.b16 %v1677
    %v2554 = vunpack.c.h.b16 %v1677
    %v2555 = vunpack.c.l.b16 %v1678
    %v2556 = vunpack.c.h.b16 %v1678
    %v2557 = vunpack.c.l.b16 %v1679
    %v2558 = vunpack.c.h.b16 %v1679
    %v2559 = vunpack.c.l.b16 %v1680
    %v2560 = vunpack.c.h.b16 %v1680
    %v2561 = vunpack.c.l.b16 %v1681
    %v2562 = vunpack.c.h.b16 %v1681
    %v2563 = vunpack.c.l.b16 %v1682
    %v2564 = vunpack.c.h.b16 %v1682
    %v2565 = vunpack.c.l.b16 %v1683
    %v2566 = vunpack.c.h.b16 %v1683
    %v2567 = vunpack.c.l.b16 %v1684
    %v2568 = vunpack.c.h.b16 %v1684
    %v2569 = vunpack.c.l.b16 %v1685
    %v2570 = vunpack.c.h.b16 %v1685
    %v2571 = vunpack.c.l.b16 %v1686
    %v2572 = vunpack.c.h.b16 %v1686
    %v2573 = vunpack.c.l.b16 %v1687
    %v2574 = vunpack.c.h.b16 %v1687
    %v2575 = vunpack.c.l.b16 %v1688
    %v2576 = vunpack.c.h.b16 %v1688
    %v2577 = vunpack.c.l.b16 %v1689
    %v2578 = vunpack.c.h.b16 %v1689
    %v2579 = vunpack.c.l.b16 %v1690
    %v2580 = vunpack.c.h.b16 %v1690
    %v2581 = vunpack.c.l.b16 %v1691
    %v2582 = vunpack.c.h.b16 %v1691
    %v2583 = vunpack.c.l.b16 %v1692
    %v2584 = vunpack.c.h.b16 %v1692
    %v2585 = vunpack.c.l.b16 %v1693
    %v2586 = vunpack.c.h.b16 %v1693
    %v2587 = vpack.c.b16 %v2525, %v2523
    %v2588 = vpack.c.b16 %v2526, %v2524
    %v2589 = vpack.c.b16 %v2529, %v2527
    %v2590 = vpack.c.b16 %v2530, %v2528
    %v2591 = vpack.c.b16 %v2533, %v2531
    %v2592 = vpack.c.b16 %v2534, %v2532
    %v2593 = vpack.c.b16 %v2537, %v2535
    %v2594 = vpack.c.b16 %v2538, %v2536
    %v2595 = vpack.c.b16 %v2541, %v2539
    %v2596 = vpack.c.b16 %v2542, %v2540
    %v2597 = vpack.c.b16 %v2545, %v2543
    %v2598 = vpack.c.b16 %v2546, %v2544
    %v2599 = vpack.c.b16 %v2549, %v2547
    %v2600 = vpack.c.b16 %v2550, %v2548
    %v2601 = vpack.c.b16 %v2553, %v2551
    %v2602 = vpack.c.b16 %v2554, %v2552
    %v2603 = vpack.c.b16 %v2557, %v2555
    %v2604 = vpack.c.b16 %v2558, %v2556
    %v2605 = vpack.c.b16 %v2561, %v2559
    %v2606 = vpack.c.b16 %v2562, %v2560
    %v2607 = vpack.c.b16 %v2565, %v2563
    %v2608 = vpack.c.b16 %v2566, %v2564
    %v2609 = vpack.c.b16 %v2569, %v2567
    %v2610 = vpack.c.b16 %v2570, %v2568
    %v2611 = vpack.c.b16 %v2573, %v2571
    %v2612 = vpack.c.b16 %v2574, %v2572
    %v2613 = vpack.c.b16 %v2577, %v2575
    %v2614 = vpack.c.b16 %v2578, %v2576
    %v2615 = vpack.c.b16 %v2581, %v2579
    %v2616 = vpack.c.b16 %v2582, %v2580
    %v2617 = vpack.c.b16 %v2585, %v2583
    %v2618 = vpack.c.b16 %v2586, %v2584
    %2651 = vmatprep.subr.bf16.mxu0 %v2602
    %2652 = vmatpush1.bf16.msra.mxu0 %v2601
    %2653 = vmatprep.subr.bf16.mxu0 %v2600
    %2654 = vmatpush1.bf16.msra.mxu0 %v2599
    %2655 = vmatprep.subr.bf16.mxu0 %v2598
    %2656 = vmatpush1.bf16.msra.mxu0 %v2597
    %2657 = vmatprep.subr.bf16.mxu0 %v2596
    %2658 = vmatpush1.bf16.msra.mxu0 %v2595
    %2659 = vmatprep.subr.bf16.mxu0 %v2594
    %2660 = vmatpush1.bf16.msra.mxu0 %v2593
    %2661 = vmatprep.subr.bf16.mxu0 %v2592
    %2662 = vmatpush1.bf16.msra.mxu0 %v2591
    %2663 = vmatprep.subr.bf16.mxu0 %v2590
    %2664 = vmatpush1.bf16.msra.mxu0 %v2589
    %2665 = vmatprep.subr.bf16.mxu0 %v2588
    %2666 = vmatpush1.bf16.msra.mxu0 %v2587
    %2667 = vmatprep.subr.bf16.mxu0 %v2618
    %2668 = vmatpush2.bf16.msra.mxu0 %v2617
    %2669 = vmatprep.subr.bf16.mxu0 %v2616
    %2670 = vmatpush2.bf16.msra.mxu0 %v2615
    %2671 = vmatprep.subr.bf16.mxu0 %v2614
    %2672 = vmatpush2.bf16.msra.mxu0 %v2613
    %2673 = vmatprep.subr.bf16.mxu0 %v2612
    %2674 = vmatpush2.bf16.msra.mxu0 %v2611
    %2675 = vmatprep.subr.bf16.mxu0 %v2610
    %2676 = vmatpush2.bf16.msra.mxu0 %v2609
    %2677 = vmatprep.subr.bf16.mxu0 %v2608
    %2678 = vmatpush2.bf16.msra.mxu0 %v2607
    %2679 = vmatprep.subr.bf16.mxu0 %v2606
    %2680 = vmatpush2.bf16.msra.mxu0 %v2605
    %2681 = vmatprep.subr.bf16.mxu0 %v2604
    %2682 = vmatpush2.bf16.msra.mxu0 %v2603
    %2683 = vmatprep.mubr.bf16.mxu0 %v2490
    %2684 = vmatmul.mubr.bf16.gmra.mxu0 %v2489
    %v2685 = vpop.f32.mrf.mxu0
    %v2686 = vadd.f32 0.0, %v2685
    %v2687 = vpop.f32.mrf.mxu0
    %v2688 = vadd.f32 0.0, %v2687
    %v2689 = vpop.f32.mrf.mxu0
    %v2690 = vpop.f32.mrf.mxu0
    %2691 = vdwg.mxu0
    %v2692 = vadd.f32 %v2421, %v2686
    %v2693 = vadd.f32 %v2423, %v2688
    %v2694 = vpack.c.bf16 %v1053, %v1053
    %v2695 = vpack.c.bf16 %v1055, %v1055
    %2696 = vmatprep.subr.bf16.mxu0 %v1850
    %2697 = vmatpush1.bf16.msra.mxu0 %v1849
    %2698 = vmatprep.subr.bf16.mxu0 %v1848
    %2699 = vmatpush1.bf16.msra.mxu0 %v1847
    %2700 = vmatprep.subr.bf16.mxu0 %v1846
    %2701 = vmatpush1.bf16.msra.mxu0 %v1845
    %2702 = vmatprep.subr.bf16.mxu0 %v1844
    %2703 = vmatpush1.bf16.msra.mxu0 %v1843
    %2704 = vmatprep.subr.bf16.mxu0 %v1842
    %2705 = vmatpush1.bf16.msra.mxu0 %v1841
    %2706 = vmatprep.subr.bf16.mxu0 %v1840
    %2707 = vmatpush1.bf16.msra.mxu0 %v1839
    %2708 = vmatprep.subr.bf16.mxu0 %v1838
    %2709 = vmatpush1.bf16.msra.mxu0 %v1837
    %2710 = vmatprep.subr.bf16.mxu0 %v1836
    %2711 = vmatpush1.bf16.msra.mxu0 %v1835
    %2712 = vmatprep.subr.bf16.mxu0 %v1866
    %2713 = vmatpush2.bf16.msra.mxu0 %v1865
    %2714 = vmatprep.subr.bf16.mxu0 %v1864
    %2715 = vmatpush2.bf16.msra.mxu0 %v1863
    %2716 = vmatprep.subr.bf16.mxu0 %v1862
    %2717 = vmatpush2.bf16.msra.mxu0 %v1861
    %2718 = vmatprep.subr.bf16.mxu0 %v1860
    %2719 = vmatpush2.bf16.msra.mxu0 %v1859
    %2720 = vmatprep.subr.bf16.mxu0 %v1858
    %2721 = vmatpush2.bf16.msra.mxu0 %v1857
    %2722 = vmatprep.subr.bf16.mxu0 %v1856
    %2723 = vmatpush2.bf16.msra.mxu0 %v1855
    %2724 = vmatprep.subr.bf16.mxu0 %v1854
    %2725 = vmatpush2.bf16.msra.mxu0 %v1853
    %2726 = vmatprep.subr.bf16.mxu0 %v1852
    %2727 = vmatpush2.bf16.msra.mxu0 %v1851
    %2728 = vmatprep.mubr.bf16.mxu0 %v2695
    %2729 = vmatmul.mubr.bf16.gmra.mxu0 %v2694
    %v2730 = vpop.f32.mrf.mxu0
    %v2731 = vadd.f32 %v1732, %v2730
    %v2732 = vpop.f32.mrf.mxu0
    %v2733 = vadd.f32 %v1736, %v2732
    %v2734 = vpop.f32.mrf.mxu0
    %v2735 = vpop.f32.mrf.mxu0
    %2736 = vdwg.mxu0
    %v2737 = vmul.f32 %v2731, %v1548
    %v2738 = vmul.f32 %v2733, %v1549
    %v2739 = vmax.f32 %v2737, %v2738
    %2740 = vmax.xlane.f32.xlu0 %v2739
    %v2741 = vpop.xlane.xlu0 %2740
    %v2742 = vsub.f32 %v2737, %v2741
    %v2743 = vsub.f32 %v2738, %v2741
    %v2744 = vmul.f32 %v2742, 1.442695
    %v2745 = vpow.pop %v2744
    %v2746 = vmul.f32 %v2743, 1.442695
    %v2747 = vpow.pop %v2746
    %v2748 = vadd.f32 %v2745, %v2747
    %2749 = vadd.xlane.f32.xlu0 %v2748
    %v2750 = vpop.xlane.xlu0 %2749
    %v2751 = vrcp.pop %v2750
    %v2752 = vmul.f32 %v2745, %v2751
    %v2753 = vmul.f32 %v2747, %v2751
    %v2754 = vmul.f32 %v2752, %v1563
    %v2755 = vmul.f32 %v2753, %v1564
    %v2756 = vpack.c.bf16 %v2754, %v2754
    %v2757 = vpack.c.bf16 %v2755, %v2755
    %v2790 = vunpack.c.l.b16 %v1694
    %v2791 = vunpack.c.h.b16 %v1694
    %v2792 = vunpack.c.l.b16 %v1695
    %v2793 = vunpack.c.h.b16 %v1695
    %v2794 = vunpack.c.l.b16 %v1696
    %v2795 = vunpack.c.h.b16 %v1696
    %v2796 = vunpack.c.l.b16 %v1697
    %v2797 = vunpack.c.h.b16 %v1697
    %v2798 = vunpack.c.l.b16 %v1698
    %v2799 = vunpack.c.h.b16 %v1698
    %v2800 = vunpack.c.l.b16 %v1699
    %v2801 = vunpack.c.h.b16 %v1699
    %v2802 = vunpack.c.l.b16 %v1700
    %v2803 = vunpack.c.h.b16 %v1700
    %v2804 = vunpack.c.l.b16 %v1701
    %v2805 = vunpack.c.h.b16 %v1701
    %v2806 = vunpack.c.l.b16 %v1702
    %v2807 = vunpack.c.h.b16 %v1702
    %v2808 = vunpack.c.l.b16 %v1703
    %v2809 = vunpack.c.h.b16 %v1703
    %v2810 = vunpack.c.l.b16 %v1704
    %v2811 = vunpack.c.h.b16 %v1704
    %v2812 = vunpack.c.l.b16 %v1705
    %v2813 = vunpack.c.h.b16 %v1705
    %v2814 = vunpack.c.l.b16 %v1706
    %v2815 = vunpack.c.h.b16 %v1706
    %v2816 = vunpack.c.l.b16 %v1707
    %v2817 = vunpack.c.h.b16 %v1707
    %v2818 = vunpack.c.l.b16 %v1708
    %v2819 = vunpack.c.h.b16 %v1708
    %v2820 = vunpack.c.l.b16 %v1709
    %v2821 = vunpack.c.h.b16 %v1709
    %v2822 = vunpack.c.l.b16 %v1710
    %v2823 = vunpack.c.h.b16 %v1710
    %v2824 = vunpack.c.l.b16 %v1711
    %v2825 = vunpack.c.h.b16 %v1711
    %v2826 = vunpack.c.l.b16 %v1712
    %v2827 = vunpack.c.h.b16 %v1712
    %v2828 = vunpack.c.l.b16 %v1713
    %v2829 = vunpack.c.h.b16 %v1713
    %v2830 = vunpack.c.l.b16 %v1714
    %v2831 = vunpack.c.h.b16 %v1714
    %v2832 = vunpack.c.l.b16 %v1715
    %v2833 = vunpack.c.h.b16 %v1715
    %v2834 = vunpack.c.l.b16 %v1716
    %v2835 = vunpack.c.h.b16 %v1716
    %v2836 = vunpack.c.l.b16 %v1717
    %v2837 = vunpack.c.h.b16 %v1717
    %v2838 = vunpack.c.l.b16 %v1718
    %v2839 = vunpack.c.h.b16 %v1718
    %v2840 = vunpack.c.l.b16 %v1719
    %v2841 = vunpack.c.h.b16 %v1719
    %v2842 = vunpack.c.l.b16 %v1720
    %v2843 = vunpack.c.h.b16 %v1720
    %v2844 = vunpack.c.l.b16 %v1721
    %v2845 = vunpack.c.h.b16 %v1721
    %v2846 = vunpack.c.l.b16 %v1722
    %v2847 = vunpack.c.h.b16 %v1722
    %v2848 = vunpack.c.l.b16 %v1723
    %v2849 = vunpack.c.h.b16 %v1723
    %v2850 = vunpack.c.l.b16 %v1724
    %v2851 = vunpack.c.h.b16 %v1724
    %v2852 = vunpack.c.l.b16 %v1725
    %v2853 = vunpack.c.h.b16 %v1725
    %v2854 = vpack.c.b16 %v2792, %v2790
    %v2855 = vpack.c.b16 %v2793, %v2791
    %v2856 = vpack.c.b16 %v2796, %v2794
    %v2857 = vpack.c.b16 %v2797, %v2795
    %v2858 = vpack.c.b16 %v2800, %v2798
    %v2859 = vpack.c.b16 %v2801, %v2799
    %v2860 = vpack.c.b16 %v2804, %v2802
    %v2861 = vpack.c.b16 %v2805, %v2803
    %v2862 = vpack.c.b16 %v2808, %v2806
    %v2863 = vpack.c.b16 %v2809, %v2807
    %v2864 = vpack.c.b16 %v2812, %v2810
    %v2865 = vpack.c.b16 %v2813, %v2811
    %v2866 = vpack.c.b16 %v2816, %v2814
    %v2867 = vpack.c.b16 %v2817, %v2815
    %v2868 = vpack.c.b16 %v2820, %v2818
    %v2869 = vpack.c.b16 %v2821, %v2819
    %v2870 = vpack.c.b16 %v2824, %v2822
    %v2871 = vpack.c.b16 %v2825, %v2823
    %v2872 = vpack.c.b16 %v2828, %v2826
    %v2873 = vpack.c.b16 %v2829, %v2827
    %v2874 = vpack.c.b16 %v2832, %v2830
    %v2875 = vpack.c.b16 %v2833, %v2831
    %v2876 = vpack.c.b16 %v2836, %v2834
    %v2877 = vpack.c.b16 %v2837, %v2835
    %v2878 = vpack.c.b16 %v2840, %v2838
    %v2879 = vpack.c.b16 %v2841, %v2839
    %v2880 = vpack.c.b16 %v2844, %v2842
    %v2881 = vpack.c.b16 %v2845, %v2843
    %v2882 = vpack.c.b16 %v2848, %v2846
    %v2883 = vpack.c.b16 %v2849, %v2847
    %v2884 = vpack.c.b16 %v2852, %v2850
    %v2885 = vpack.c.b16 %v2853, %v2851
    %2918 = vmatprep.subr.bf16.mxu0 %v2869
    %2919 = vmatpush1.bf16.msra.mxu0 %v2868
    %2920 = vmatprep.subr.bf16.mxu0 %v2867
    %2921 = vmatpush1.bf16.msra.mxu0 %v2866
    %2922 = vmatprep.subr.bf16.mxu0 %v2865
    %2923 = vmatpush1.bf16.msra.mxu0 %v2864
    %2924 = vmatprep.subr.bf16.mxu0 %v2863
    %2925 = vmatpush1.bf16.msra.mxu0 %v2862
    %2926 = vmatprep.subr.bf16.mxu0 %v2861
    %2927 = vmatpush1.bf16.msra.mxu0 %v2860
    %2928 = vmatprep.subr.bf16.mxu0 %v2859
    %2929 = vmatpush1.bf16.msra.mxu0 %v2858
    %2930 = vmatprep.subr.bf16.mxu0 %v2857
    %2931 = vmatpush1.bf16.msra.mxu0 %v2856
    %2932 = vmatprep.subr.bf16.mxu0 %v2855
    %2933 = vmatpush1.bf16.msra.mxu0 %v2854
    %2934 = vmatprep.subr.bf16.mxu0 %v2885
    %2935 = vmatpush2.bf16.msra.mxu0 %v2884
    %2936 = vmatprep.subr.bf16.mxu0 %v2883
    %2937 = vmatpush2.bf16.msra.mxu0 %v2882
    %2938 = vmatprep.subr.bf16.mxu0 %v2881
    %2939 = vmatpush2.bf16.msra.mxu0 %v2880
    %2940 = vmatprep.subr.bf16.mxu0 %v2879
    %2941 = vmatpush2.bf16.msra.mxu0 %v2878
    %2942 = vmatprep.subr.bf16.mxu0 %v2877
    %2943 = vmatpush2.bf16.msra.mxu0 %v2876
    %2944 = vmatprep.subr.bf16.mxu0 %v2875
    %2945 = vmatpush2.bf16.msra.mxu0 %v2874
    %2946 = vmatprep.subr.bf16.mxu0 %v2873
    %2947 = vmatpush2.bf16.msra.mxu0 %v2872
    %2948 = vmatprep.subr.bf16.mxu0 %v2871
    %2949 = vmatpush2.bf16.msra.mxu0 %v2870
    %2950 = vmatprep.mubr.bf16.mxu0 %v2757
    %2951 = vmatmul.mubr.bf16.gmra.mxu0 %v2756
    %v2952 = vpop.f32.mrf.mxu0
    %v2953 = vadd.f32 0.0, %v2952
    %v2954 = vpop.f32.mrf.mxu0
    %v2955 = vadd.f32 0.0, %v2954
    %v2956 = vpop.f32.mrf.mxu0
    %v2957 = vpop.f32.mrf.mxu0
    %2958 = vdwg.mxu0
    %v2959 = vadd.f32 %v2692, %v2953
    %v2960 = vadd.f32 %v2693, %v2955
    %s2961 = scalar_lea.vmem [#allocation13], 3
    %v2962 = vld [vmem:[%s2961] ss:$8 sm:$0x3]
    %v2964 = vlaneseq
    %v2965 = vshrl.u32 %v2964, 7
    %v2966 = vsub.s32 0, %v2965
    %v2967 = vrot.slane %v2962, %v2966
    %v2968 = vlaneseq
    %v2969 = vshrl.u32 %v2968, 7
    %v2970 = vsub.s32 1, %v2969
    %v2971 = vrot.slane %v2962, %v2970
    %v2974 = vadd.f32 %v2959, %v2967
    %v2975 = vadd.f32 %v2960, %v2971
    %v2976 = vmax.f32 %v2974, 0.0
    %v2977 = vmax.f32 %v2975, 0.0
    %v2978 = vpack.c.bf16 %v2976, %v2976
    %v2979 = vpack.c.bf16 %v2977, %v2977
    %v2980 = vld [vmem:[#allocation11] sm:$0xf]
    %v2981 = vld [vmem:[#allocation11 + $0x4] sm:$0xf]
    %v2982 = vld [vmem:[#allocation11 + $0x8] sm:$0xf]
    %v2983 = vld [vmem:[#allocation11 + $0xc] sm:$0xf]
    %v2984 = vld [vmem:[#allocation11 + $0x10] sm:$0xf]
    %v2985 = vld [vmem:[#allocation11 + $0x14] sm:$0xf]
    %v2986 = vld [vmem:[#allocation11 + $0x18] sm:$0xf]
    %v2987 = vld [vmem:[#allocation11 + $0x1c] sm:$0xf]
    %v2988 = vld [vmem:[#allocation11 + $0x20] sm:$0xf]
    %v2989 = vld [vmem:[#allocation11 + $0x24] sm:$0xf]
    %v2990 = vld [vmem:[#allocation11 + $0x28] sm:$0xf]
    %v2991 = vld [vmem:[#allocation11 + $0x2c] sm:$0xf]
    %v2992 = vld [vmem:[#allocation11 + $0x30] sm:$0xf]
    %v2993 = vld [vmem:[#allocation11 + $0x34] sm:$0xf]
    %v2994 = vld [vmem:[#allocation11 + $0x38] sm:$0xf]
    %v2995 = vld [vmem:[#allocation11 + $0x3c] sm:$0xf]
    %v2996 = vld [vmem:[#allocation11 + $0x40] sm:$0xf]
    %v2997 = vld [vmem:[#allocation11 + $0x44] sm:$0xf]
    %v2998 = vld [vmem:[#allocation11 + $0x48] sm:$0xf]
    %v2999 = vld [vmem:[#allocation11 + $0x4c] sm:$0xf]
    %v3000 = vld [vmem:[#allocation11 + $0x50] sm:$0xf]
    %v3001 = vld [vmem:[#allocation11 + $0x54] sm:$0xf]
    %v3002 = vld [vmem:[#allocation11 + $0x58] sm:$0xf]
    %v3003 = vld [vmem:[#allocation11 + $0x5c] sm:$0xf]
    %v3004 = vld [vmem:[#allocation11 + $0x60] sm:$0xf]
    %v3005 = vld [vmem:[#allocation11 + $0x64] sm:$0xf]
    %v3006 = vld [vmem:[#allocation11 + $0x68] sm:$0xf]
    %v3007 = vld [vmem:[#allocation11 + $0x6c] sm:$0xf]
    %v3008 = vld [vmem:[#allocation11 + $0x70] sm:$0xf]
    %v3009 = vld [vmem:[#allocation11 + $0x74] sm:$0xf]
    %v3010 = vld [vmem:[#allocation11 + $0x78] sm:$0xf]
    %v3011 = vld [vmem:[#allocation11 + $0x7c] sm:$0xf]
    %v3012 = vld [vmem:[#allocation13 + $0x4] ss:$0 sm:$0xff]
    %v3045 = vunpack.c.l.b16 %v2980
    %v3046 = vunpack.c.l.b16 %v2981
    %v3047 = vunpack.c.l.b16 %v2982
    %v3048 = vunpack.c.l.b16 %v2983
    %v3049 = vunpack.c.l.b16 %v2984
    %v3050 = vunpack.c.l.b16 %v2985
    %v3051 = vunpack.c.l.b16 %v2986
    %v3052 = vunpack.c.l.b16 %v2987
    %v3053 = vunpack.c.l.b16 %v2988
    %v3054 = vunpack.c.l.b16 %v2989
    %v3055 = vunpack.c.l.b16 %v2990
    %v3056 = vunpack.c.l.b16 %v2991
    %v3057 = vunpack.c.l.b16 %v2992
    %v3058 = vunpack.c.l.b16 %v2993
    %v3059 = vunpack.c.l.b16 %v2994
    %v3060 = vunpack.c.l.b16 %v2995
    %v3061 = vunpack.c.l.b16 %v2996
    %v3062 = vunpack.c.l.b16 %v2997
    %v3063 = vunpack.c.l.b16 %v2998
    %v3064 = vunpack.c.l.b16 %v2999
    %v3065 = vunpack.c.l.b16 %v3000
    %v3066 = vunpack.c.l.b16 %v3001
    %v3067 = vunpack.c.l.b16 %v3002
    %v3068 = vunpack.c.l.b16 %v3003
    %v3069 = vunpack.c.l.b16 %v3004
    %v3070 = vunpack.c.l.b16 %v3005
    %v3071 = vunpack.c.l.b16 %v3006
    %v3072 = vunpack.c.l.b16 %v3007
    %v3073 = vunpack.c.l.b16 %v3008
    %v3074 = vunpack.c.l.b16 %v3009
    %v3075 = vunpack.c.l.b16 %v3010
    %v3076 = vunpack.c.l.b16 %v3011
    %v3077 = vpack.c.b16 %v3046, %v3045
    %v3078 = vpack.c.b16 %v3048, %v3047
    %v3079 = vpack.c.b16 %v3050, %v3049
    %v3080 = vpack.c.b16 %v3052, %v3051
    %v3081 = vpack.c.b16 %v3054, %v3053
    %v3082 = vpack.c.b16 %v3056, %v3055
    %v3083 = vpack.c.b16 %v3058, %v3057
    %v3084 = vpack.c.b16 %v3060, %v3059
    %v3085 = vpack.c.b16 %v3062, %v3061
    %v3086 = vpack.c.b16 %v3064, %v3063
    %v3087 = vpack.c.b16 %v3066, %v3065
    %v3088 = vpack.c.b16 %v3068, %v3067
    %v3089 = vpack.c.b16 %v3070, %v3069
    %v3090 = vpack.c.b16 %v3072, %v3071
    %v3091 = vpack.c.b16 %v3074, %v3073
    %v3092 = vpack.c.b16 %v3076, %v3075
    %3109 = vmatprep.subr.bf16.mxu0 0
    %3110 = vmatpush1.bf16.msra.mxu0 %v3084
    %3111 = vmatprep.subr.bf16.mxu0 0
    %3112 = vmatpush1.bf16.msra.mxu0 %v3083
    %3113 = vmatprep.subr.bf16.mxu0 0
    %3114 = vmatpush1.bf16.msra.mxu0 %v3082
    %3115 = vmatprep.subr.bf16.mxu0 0
    %3116 = vmatpush1.bf16.msra.mxu0 %v3081
    %3117 = vmatprep.subr.bf16.mxu0 0
    %3118 = vmatpush1.bf16.msra.mxu0 %v3080
    %3119 = vmatprep.subr.bf16.mxu0 0
    %3120 = vmatpush1.bf16.msra.mxu0 %v3079
    %3121 = vmatprep.subr.bf16.mxu0 0
    %3122 = vmatpush1.bf16.msra.mxu0 %v3078
    %3123 = vmatprep.subr.bf16.mxu0 0
    %3124 = vmatpush1.bf16.msra.mxu0 %v3077
    %3125 = vmatprep.subr.bf16.mxu0 0
    %3126 = vmatpush2.bf16.msra.mxu0 %v3092
    %3127 = vmatprep.subr.bf16.mxu0 0
    %3128 = vmatpush2.bf16.msra.mxu0 %v3091
    %3129 = vmatprep.subr.bf16.mxu0 0
    %3130 = vmatpush2.bf16.msra.mxu0 %v3090
    %3131 = vmatprep.subr.bf16.mxu0 0
    %3132 = vmatpush2.bf16.msra.mxu0 %v3089
    %3133 = vmatprep.subr.bf16.mxu0 0
    %3134 = vmatpush2.bf16.msra.mxu0 %v3088
    %3135 = vmatprep.subr.bf16.mxu0 0
    %3136 = vmatpush2.bf16.msra.mxu0 %v3087
    %3137 = vmatprep.subr.bf16.mxu0 0
    %3138 = vmatpush2.bf16.msra.mxu0 %v3086
    %3139 = vmatprep.subr.bf16.mxu0 0
    %3140 = vmatpush2.bf16.msra.mxu0 %v3085
    %3141 = vmatprep.mubr.bf16.mxu0 %v2979
    %3142 = vmatmul.mubr.bf16.gmra.mxu0 %v2978
    %v3143 = vpop.f32.mrf.mxu0
    %v3144 = vadd.f32 %v3012, %v3143
    %v3145 = vpop.f32.mrf.mxu0
    %v3146 = vpop.f32.mrf.mxu0
    %v3147 = vpop.f32.mrf.mxu0
    %3148 = vdwg.mxu0
    %3149 = vst [vmem:[#allocation14] sm:$0xff] %v3144
    // Predicated region
    $region58: #{tpu_custom_call.1} parent=1 // pred_check
      _
    $region59: #{tpu_custom_call.1} parent=1 // pred_check_branch
      %3151 = sbr.rel (0) target = $region61
    $region60: #{tpu_custom_call.1} parent=1 // pred_region
      %s3153 = ssub.s32 128, 128
      %3154 = vsyncadd [#allocation4], %s3153
      %s3156 = sshll.u32 [#allocation14], 4
      %s3157 = int_to_ptr.vmem [resolvable:$true] %s3156
      %3159 = dma.vmem_to_hbm [thread:$0]  %s3157, 128, %s7, [#allocation4]
    $region61: #{tpu_custom_call.1} parent=1 // pred_fallthru
      _
    // Predicated region
    $region62: #{tpu_custom_call.1} parent=1 // pred_check
      _
    $region63: #{tpu_custom_call.1} parent=1 // pred_check_branch
      %3161 = sbr.rel (0) target = $region65
    $region64: #{tpu_custom_call.1} parent=1 // pred_region
      %3162 = dma.done [#allocation4], 128
    $region65: #{tpu_custom_call.1} parent=1 // pred_fallthru
      _
    %3163 = vsyncpa [#allocation3], 1
    %3164 = vsyncpa [#allocation6], 1
    %3165 = vsyncpa [#allocation9], 1
    %3166 = vsyncpa [#allocation12], 1
    %3167 = vsyncpa [#allocation4], 1

</llo_original>
